<compile_context>
chip_gen: v7x
topology: tpu7x:2x2x1
jax: 0.10.0
libtpu: 0.0.40
codegen_flags: <defaults>
</compile_context>

<pallas_src>
import math

import jax
import jax.numpy as jnp
from jax.experimental import pallas as pl
from jax.experimental.pallas import tpu as pltpu

_EPS = 1e-5             # torch GroupNorm default
_USE_TANH_GELU = False  # flip on v5e if the VALU slot saturates (tanh lands on the EUP)


# ----------------------------------------------------------------------------- helpers
def _erf(x):
    # Abramowitz & Stegun 7.1.26, |err| < 1.5e-7 -> keeps F.gelu's exact-erf semantics.
    ax = jnp.abs(x)
    t = 1.0 / (1.0 + 0.3275911 * ax)
    poly = ((((1.061405429 * t - 1.453152027) * t + 1.421413741) * t
             - 0.284496736) * t + 0.254829592) * t
    y = 1.0 - poly * jnp.exp(-ax * ax)
    return jnp.where(x >= 0, y, -y)


def _gelu(x):
    if _USE_TANH_GELU:
        c = math.sqrt(2.0 / math.pi)
        return 0.5 * x * (1.0 + jnp.tanh(c * (x + 0.044715 * x * x * x)))
    return 0.5 * x * (1.0 + _erf(x * (1.0 / math.sqrt(2.0))))


def _upsample2x_bilinear_align_corners(x):  # NCHW, JAX glue
    # TODO(synk): bilinear upsample (data-dependent gather/lerp) stays JAX glue;
    # the conv / GN / GELU hot path lives in the Pallas kernel.
    B, C, H, W = x.shape
    Ho, Wo = 2 * H, 2 * W
    ys = jnp.arange(Ho, dtype=jnp.float32) * ((H - 1) / (Ho - 1))
    xs = jnp.arange(Wo, dtype=jnp.float32) * ((W - 1) / (Wo - 1))
    y0 = jnp.floor(ys).astype(jnp.int32)
    x0 = jnp.floor(xs).astype(jnp.int32)
    y1 = jnp.minimum(y0 + 1, H - 1)
    x1 = jnp.minimum(x0 + 1, W - 1)
    wy = (ys - y0.astype(jnp.float32))[None, None, :, None]
    wx = (xs - x0.astype(jnp.float32))[None, None, None, :]
    rows = x[:, :, y0, :] * (1.0 - wy) + x[:, :, y1, :] * wy          # [B,C,Ho,W]
    return rows[:, :, :, x0] * (1.0 - wx) + rows[:, :, :, x1] * wx    # [B,C,Ho,Wo]


# ------------------------------------------------------------------- Pallas kernel
def _make_kernel(*, H, W, Cin, Cout, flat_len, cdt, fold, has_res, eps):
    L = H * W
    inv_n = 1.0 / float(Cout * H * W)

    def kernel(x_ref, w_ref, g_ref, b_ref, o_ref):
        # x_ref: (1, Cin, flat_len) bf16  row-haloed (2 zero rows), flattened, lane-padded
        # w_ref: (Cout, 9*Cin)      cdt   tap-folded conv weights
        # g_ref: (Cout, 1)          f32   GN gamma
        # b_ref: (1, Cout, 1)       f32   GN beta (+ per-sample time-emb, folded on host)
        # o_ref: (1, Cout, L)
        x = x_ref[0].astype(cdt)                                      # (Cin, flat_len)

        # column-edge masks for the width (kw) shifts done in-kernel
        col = jax.lax.broadcasted_iota(jnp.int32, (1, L), 1) % W
        not_left = (col != 0).astype(cdt)        # kw == 0 reads column c-1 (zero at c == 0)
        not_right = (col != W - 1).astype(cdt)   # kw == 2 reads column c+1 (zero at c == W-1)

        taps = []
        for kh in range(3):
            for kw in range(3):
                s = kh * W + (kw - 1)            # flat shift of tap (kh, kw)
                xs = pltpu.roll(x, shift=(-s) % flat_len, axis=1) if (s % flat_len) else x
                tap = xs[:, :L]                  # 128-aligned start; XLU roll did the shift
                if kw == 0:
                    tap = tap * not_left
                elif kw == 2:
                    tap = tap * not_right
                taps.append(tap)
        res = taps[4]                            # (kh=1, kw=1): the un-shifted input window

        if fold:
            # taps folded into the contraction dim -> one (Cout, 9*Cin) @ (9*Cin, L) GEMM
            patch = jnp.concatenate(taps, axis=0)                     # sublane-tile aligned pieces
            conv = jnp.dot(w_ref[...], patch, preferred_element_type=jnp.float32)
        else:
            # fallback when the 9*Cin concat pieces cannot be sublane-tile aligned
            conv = jnp.zeros((Cout, L), jnp.float32)
            for k in range(9):
                conv = conv + jnp.dot(w_ref[:, k * Cin:(k + 1) * Cin], taps[k],
                                      preferred_element_type=jnp.float32)

        # GroupNorm(1, C): per-sample stats over (C, H, W); conv computed exactly once.
        s1 = jnp.sum(jnp.sum(conv, axis=1, keepdims=True), axis=0, keepdims=True)
        s2 = jnp.sum(jnp.sum(conv * conv, axis=1, keepdims=True), axis=0, keepdims=True)
        mean = s1 * inv_n
        var = jnp.maximum(s2 * inv_n - mean * mean, 0.0)  # clamp: cancellation can go negative
        rstd = jax.lax.rsqrt(var + eps)
        scale = g_ref[...] * rstd                         # (Cout, 1)
        shift = b_ref[0] - mean * scale                   # (Cout, 1); beta (+ emb) folded on host
        y = conv * scale + shift

        if has_res:
            # residual uses the bf16-rounded input window (deliberate precision deviation).
            y = _gelu(res.astype(jnp.float32) + y)
        o_ref[0] = y.astype(o_ref.dtype)

    return kernel


def fused_conv3x3_gn(x_nchw, w_oihw, gamma, beta, *, residual=False, emb=None,
                     eps=_EPS, out_dtype=jnp.float32):
    """3x3 SAME conv (no bias) -> GroupNorm(1,C) -> [gelu(x + .)] -> [+ emb], NCHW in/out."""
    B, Cin, H, W = x_nchw.shape
    Cout = w_oihw.shape[0]
    if residual:
        assert Cin == Cout, "residual DoubleConv requires Cin == Cout"
    L = H * W
    flat_len = -(-((H + 2) * W) // 128) * 128         # lane-pad the flattened row halo

    # in-VMEM GEMM dtype: the tap-fold concat needs sublane-tile aligned pieces.
    if Cin % 16 == 0:
        cdt, fold = jnp.bfloat16, True                # realistic UNet channel widths
    elif Cin % 8 == 0:
        cdt, fold = jnp.float32, True                 # e.g. this test's Cin = 8
    else:
        cdt, fold = jnp.float32, False                # 9 accumulated dots fallback

    # HBM-side activations: bf16, row halo only (~1.13x, vs 3.4x pre-shifted copies).
    xp = jnp.pad(x_nchw, ((0, 0), (0, 0), (1, 1), (0, 0))).reshape(B, Cin, (H + 2) * W)
    xp = jnp.pad(xp, ((0, 0), (0, 0), (0, flat_len - (H + 2) * W)))
    xt = xp.astype(jnp.bfloat16)

    # conv weights with the 9 taps folded into the contraction dim:
    # column (kh*3 + kw)*Cin + ci  <->  w[co, ci, kh, kw]
    w2 = jnp.transpose(w_oihw, (0, 2, 3, 1)).reshape(Cout, 9 * Cin).astype(cdt)
    g2 = gamma.reshape(Cout, 1).astype(jnp.float32)
    beta_eff = jnp.broadcast_to(beta.reshape(1, Cout).astype(jnp.float32), (B, Cout))
    if emb is not None:                               # fold broadcast time-emb add into GN shift
        beta_eff = beta_eff + emb.astype(jnp.float32)
    beta_eff = beta_eff.reshape(B, Cout, 1)

    kernel = _make_kernel(H=H, W=W, Cin=Cin, Cout=Cout, flat_len=flat_len,
                          cdt=cdt, fold=fold, has_res=residual, eps=eps)

    # ---- tight, shape-derived VMEM request (capped at 40 MiB for v7x's 64 MiB) ----
    def _padded_bytes(rows, cols, itemsize):
        sub = 8 * (4 // itemsize)
        return (-(-rows // sub) * sub) * (-(-cols // 128) * 128) * itemsize

    cds = jnp.dtype(cdt).itemsize
    ods = jnp.dtype(out_dtype).itemsize
    est = (2 * _padded_bytes(Cin, flat_len, 2)        # double-buffered bf16 input block
           + _padded_bytes(Cin, flat_len, cds)        # in-kernel cast copy
           + 2 * _padded_bytes(Cout, 9 * Cin, cds)    # weights
           + 4 * _padded_bytes(Cout, 1, 4)            # gamma / beta blocks
           + 2 * _padded_bytes(Cout, L, ods)          # double-buffered output block
           + 2 * _padded_bytes(9 * Cin, L, cds)       # assembled patch (+ staging)
           + 9 * _padded_bytes(Cin, L, cds)           # rolled tap temporaries
           + 6 * _padded_bytes(Cout, L, 4))           # conv result + GN / GELU temporaries
    vmem_limit = int(min(40 * 2**20, max(2 * est, 8 * 2**20)))

    cost = pl.CostEstimate(
        flops=int(2 * B * H * W * 9 * Cin * Cout),    # conv is computed exactly once now
        transcendentals=int(B * H * W * Cout) if residual else 0,
        bytes_accessed=int(xt.size * 2 + w2.size * cds + (g2.size + beta_eff.size) * 4
                           + B * Cout * L * ods))

    out = pl.pallas_call(
        kernel,
        out_shape=jax.ShapeDtypeStruct((B, Cout, L), out_dtype),
        grid=(B,),
        in_specs=[pl.BlockSpec((1, Cin, flat_len), lambda b: (b, 0, 0)),
                  pl.BlockSpec((Cout, 9 * Cin), lambda b: (0, 0)),
                  pl.BlockSpec((Cout, 1), lambda b: (0, 0)),
                  pl.BlockSpec((1, Cout, 1), lambda b: (b, 0, 0))],
        out_specs=pl.BlockSpec((1, Cout, L), lambda b: (b, 0, 0)),
        compiler_params=pltpu.CompilerParams(
            dimension_semantics=("parallel",),
            vmem_limit_bytes=vmem_limit),
        cost_estimate=cost,
    )(xt, w2, g2, beta_eff)
    return out.reshape(B, Cout, H, W)


# ------------------------------------------------------------------- Up.forward
def up_forward(params, x, skip_x, t):
    """x: [B, Cx, H, W]  skip_x: [B, Cs, 2H, 2W]  t: [B, emb_dim]  (NCHW interface)."""
    xu = _upsample2x_bilinear_align_corners(x)                        # [B, Cx, 2H, 2W]
    xc = jnp.concatenate([skip_x, xu], axis=1)                        # [B, Cin, 2H, 2W]

    # DoubleConv(in, in, residual=True): gelu(x + GN(Conv(x)))   (bf16 intermediate)
    h1 = fused_conv3x3_gn(xc, params["conv1_w"], params["gn1_g"], params["gn1_b"],
                          residual=True, out_dtype=jnp.bfloat16)

    # time embedding: SiLU + Linear is a micro-GEMM -> plain JAX; its broadcast add
    # is folded into the GN shift of the second conv inside the Pallas kernel.
    emb = jnp.dot(jax.nn.silu(t), params["emb_w"].T,
                  precision=jax.lax.Precision.HIGHEST) + params["emb_b"]   # [B, Cout]

    # DoubleConv(in, out): GN(Conv(h1)) + broadcast emb (folded)
    out = fused_conv3x3_gn(h1, params["conv2_w"], params["gn2_g"], params["gn2_b"],
                           emb=emb, out_dtype=jnp.float32)
    return out                                                        # [B, Cout, 2H, 2W]


# ------------------------------------------------------------------- pure-JAX reference
def up_reference(params, x, skip_x, t):
    def conv(z, w):
        return jax.lax.conv_general_dilated(
            z, w, (1, 1), ((1, 1), (1, 1)),
            dimension_numbers=("NCHW", "OIHW", "NCHW"),
            precision=jax.lax.Precision.HIGHEST)

    def gn(z, g, b):
        mean = jnp.mean(z, axis=(1, 2, 3), keepdims=True)
        var = jnp.var(z, axis=(1, 2, 3), keepdims=True)
        zn = (z - mean) * jax.lax.rsqrt(var + _EPS)
        return zn * g[None, :, None, None] + b[None, :, None, None]

    xu = _upsample2x_bilinear_align_corners(x)
    xc = jnp.concatenate([skip_x, xu], axis=1)
    h1 = jax.nn.gelu(xc + gn(conv(xc, params["conv1_w"]), params["gn1_g"], params["gn1_b"]),
                     approximate=False)
    h2 = gn(conv(h1, params["conv2_w"]), params["gn2_g"], params["gn2_b"])
    emb = jnp.dot(jax.nn.silu(t), params["emb_w"].T,
                  precision=jax.lax.Precision.HIGHEST) + params["emb_b"]
    return h2 + emb[:, :, None, None]


# ------------------------------------------------------------------- main
if __name__ == "__main__":
    B, Cx, H, W = 2, 4, 16, 16        # x before upsample
    Cs = 4                            # skip channels
    in_channels = Cx + Cs             # 8
    out_channels = 4
    emb_dim = 32

    key = jax.random.PRNGKey(0)
    ks = jax.random.split(key, 12)

    params = {
        "conv1_w": jax.random.normal(ks[0], (in_channels, in_channels, 3, 3),
                                     jnp.float32) / math.sqrt(9 * in_channels),
        "gn1_g": 1.0 + 0.1 * jax.random.normal(ks[1], (in_channels,), jnp.float32),
        "gn1_b": 0.1 * jax.random.normal(ks[2], (in_channels,), jnp.float32),
        "conv2_w": jax.random.normal(ks[3], (out_channels, in_channels, 3, 3),
                                     jnp.float32) / math.sqrt(9 * in_channels),
        "gn2_g": 1.0 + 0.1 * jax.random.normal(ks[4], (out_channels,), jnp.float32),
        "gn2_b": 0.1 * jax.random.normal(ks[5], (out_channels,), jnp.float32),
        "emb_w": jax.random.normal(ks[6], (out_channels, emb_dim),
                                   jnp.float32) / math.sqrt(emb_dim),
        "emb_b": 0.1 * jax.random.normal(ks[7], (out_channels,), jnp.float32),
    }

    x = jax.random.normal(ks[8], (B, Cx, H, W), jnp.float32)
    skip_x = jax.random.normal(ks[9], (B, Cs, 2 * H, 2 * W), jnp.float32)
    t = jax.random.normal(ks[10], (B, emb_dim), jnp.float32)

    fwd = jax.jit(up_forward)
    out = jax.block_until_ready(fwd(params, x, skip_x, t))
    assert out.shape == (B, out_channels, 2 * H, 2 * W), out.shape
    assert bool(jnp.all(jnp.isfinite(out)))

    ref = jax.block_until_ready(up_reference(params, x, skip_x, t))
    assert bool(jnp.allclose(out, ref, atol=5e-2, rtol=5e-2)), float(jnp.max(jnp.abs(out - ref)))

    print("KERNEL_OK")
</pallas_src>

<mosaic_0001>
module attributes {stable_mosaic.version = 11 : i64} {
  func.func @kernel(%arg0: i32, %arg1: memref<1x8x1152xbf16, #tpu.memory_space<vmem>>, %arg2: memref<8x72xf32, #tpu.memory_space<vmem>>, %arg3: memref<8x1xf32, #tpu.memory_space<vmem>>, %arg4: memref<1x8x1xf32, #tpu.memory_space<vmem>>, %arg5: memref<1x8x1024xbf16, #tpu.memory_space<vmem>>) attributes {dimension_semantics = [#tpu.dimension_semantics<parallel>], iteration_bounds = array<i64: 2>, scalar_prefetch = 0 : i64, scratch_operands = 0 : i64, tpu.core_type = #tpu.core_type<tc>, window_params = [{transform_indices = @transform_0, window_bounds = array<i64: 1, 8, 1152>}, {pipeline_mode = #tpu.pipeline_mode<synchronous>, transform_indices = @transform_1, window_bounds = array<i64: 8, 72>}, {pipeline_mode = #tpu.pipeline_mode<synchronous>, transform_indices = @transform_2, window_bounds = array<i64: 8, 1>}, {transform_indices = @transform_3, window_bounds = array<i64: 1, 8, 1>}, {transform_indices = @transform_4, window_bounds = array<i64: 1, 8, 1024>}]} {
    %c0 = arith.constant 0 : index
    %c0_0 = arith.constant 0 : index
    %c0_1 = arith.constant 0 : index
    %0 = vector.load %arg1[%c0, %c0_0, %c0_1] : memref<1x8x1152xbf16, #tpu.memory_space<vmem>>, vector<1x8x1152xbf16>
    %1 = vector.shape_cast %0 : vector<1x8x1152xbf16> to vector<8x1152xbf16>
    %2 = arith.extf %1 : vector<8x1152xbf16> to vector<8x1152xf32>
    %3 = tpu.iota {dimensions = array<i32: 1>} : vector<1x1024xi32>
    %c32_i32 = arith.constant 32 : i32
    %c0_i32 = arith.constant 0 : i32
    %4 = arith.cmpi eq, %c32_i32, %c0_i32 : i32
    %c1_i32 = arith.constant 1 : i32
    %5 = arith.select %4, %c1_i32, %c32_i32 : i32
    %6 = vector.broadcast %5 : i32 to vector<1x1024xi32>
    %7 = arith.remsi %3, %6 : vector<1x1024xi32>
    %c0_i32_2 = arith.constant 0 : i32
    %8 = vector.broadcast %c0_i32_2 : i32 to vector<1x1024xi32>
    %9 = arith.cmpi ne, %7, %8 : vector<1x1024xi32>
    %c0_i32_3 = arith.constant 0 : i32
    %10 = vector.broadcast %c0_i32_3 : i32 to vector<1x1024xi32>
    %11 = arith.cmpi slt, %7, %10 : vector<1x1024xi32>
    %c0_i32_4 = arith.constant 0 : i32
    %12 = arith.cmpi slt, %5, %c0_i32_4 : i32
    %13 = vector.broadcast %12 : i1 to vector<1x1024xi1>
    %14 = vector.broadcast %13 : vector<1x1024xi1> to vector<1x1024xi1>
    %15 = arith.xori %11, %14 : vector<1x1024xi1>
    %16 = arith.andi %15, %9 : vector<1x1024xi1>
    %17 = vector.broadcast %5 : i32 to vector<1x1024xi32>
    %18 = arith.addi %7, %17 : vector<1x1024xi32>
    %19 = arith.select %16, %18, %7 : vector<1x1024xi1>, vector<1x1024xi32>
    %c0_i32_5 = arith.constant 0 : i32
    %20 = vector.broadcast %c0_i32_5 : i32 to vector<1x1024xi32>
    %21 = arith.cmpi ne, %19, %20 : vector<1x1024xi32>
    %22 = arith.extui %21 : vector<1x1024xi1> to vector<1x1024xi32>
    %23 = arith.sitofp %22 : vector<1x1024xi32> to vector<1x1024xf32>
    %c31_i32 = arith.constant 31 : i32
    %24 = vector.broadcast %c31_i32 : i32 to vector<1x1024xi32>
    %25 = arith.cmpi ne, %19, %24 : vector<1x1024xi32>
    %26 = arith.extui %25 : vector<1x1024xi1> to vector<1x1024xi32>
    %27 = arith.sitofp %26 : vector<1x1024xi32> to vector<1x1024xf32>
    %c1_i32_6 = arith.constant 1 : i32
    %28 = tpu.dynamic_rotate %2 by %c1_i32_6 dim 1 : vector<8x1152xf32>, i32 -> vector<8x1152xf32>
    %29 = vector.extract_strided_slice %28 {offsets = [0, 0], sizes = [8, 1024], strides = [1, 1]} : vector<8x1152xf32> to vector<8x1024xf32>
    %30 = vector.broadcast %23 : vector<1x1024xf32> to vector<8x1024xf32>
    %31 = arith.mulf %29, %30 : vector<8x1024xf32>
    %32 = vector.extract_strided_slice %2 {offsets = [0, 0], sizes = [8, 1024], strides = [1, 1]} : vector<8x1152xf32> to vector<8x1024xf32>
    %c1151_i32 = arith.constant 1151 : i32
    %33 = tpu.dynamic_rotate %2 by %c1151_i32 dim 1 : vector<8x1152xf32>, i32 -> vector<8x1152xf32>
    %34 = vector.extract_strided_slice %33 {offsets = [0, 0], sizes = [8, 1024], strides = [1, 1]} : vector<8x1152xf32> to vector<8x1024xf32>
    %35 = vector.broadcast %27 : vector<1x1024xf32> to vector<8x1024xf32>
    %36 = arith.mulf %34, %35 : vector<8x1024xf32>
    %c1121_i32 = arith.constant 1121 : i32
    %37 = tpu.dynamic_rotate %2 by %c1121_i32 dim 1 : vector<8x1152xf32>, i32 -> vector<8x1152xf32>
    %38 = vector.extract_strided_slice %37 {offsets = [0, 0], sizes = [8, 1024], strides = [1, 1]} : vector<8x1152xf32> to vector<8x1024xf32>
    %39 = vector.broadcast %23 : vector<1x1024xf32> to vector<8x1024xf32>
    %40 = arith.mulf %38, %39 : vector<8x1024xf32>
    %c1120_i32 = arith.constant 1120 : i32
    %41 = tpu.dynamic_rotate %2 by %c1120_i32 dim 1 : vector<8x1152xf32>, i32 -> vector<8x1152xf32>
    %42 = vector.extract_strided_slice %41 {offsets = [0, 0], sizes = [8, 1024], strides = [1, 1]} : vector<8x1152xf32> to vector<8x1024xf32>
    %c1119_i32 = arith.constant 1119 : i32
    %43 = tpu.dynamic_rotate %2 by %c1119_i32 dim 1 : vector<8x1152xf32>, i32 -> vector<8x1152xf32>
    %44 = vector.extract_strided_slice %43 {offsets = [0, 0], sizes = [8, 1024], strides = [1, 1]} : vector<8x1152xf32> to vector<8x1024xf32>
    %45 = vector.broadcast %27 : vector<1x1024xf32> to vector<8x1024xf32>
    %46 = arith.mulf %44, %45 : vector<8x1024xf32>
    %c1089_i32 = arith.constant 1089 : i32
    %47 = tpu.dynamic_rotate %2 by %c1089_i32 dim 1 : vector<8x1152xf32>, i32 -> vector<8x1152xf32>
    %48 = vector.extract_strided_slice %47 {offsets = [0, 0], sizes = [8, 1024], strides = [1, 1]} : vector<8x1152xf32> to vector<8x1024xf32>
    %49 = vector.broadcast %23 : vector<1x1024xf32> to vector<8x1024xf32>
    %50 = arith.mulf %48, %49 : vector<8x1024xf32>
    %c1088_i32 = arith.constant 1088 : i32
    %51 = tpu.dynamic_rotate %2 by %c1088_i32 dim 1 : vector<8x1152xf32>, i32 -> vector<8x1152xf32>
    %52 = vector.extract_strided_slice %51 {offsets = [0, 0], sizes = [8, 1024], strides = [1, 1]} : vector<8x1152xf32> to vector<8x1024xf32>
    %c1087_i32 = arith.constant 1087 : i32
    %53 = tpu.dynamic_rotate %2 by %c1087_i32 dim 1 : vector<8x1152xf32>, i32 -> vector<8x1152xf32>
    %54 = vector.extract_strided_slice %53 {offsets = [0, 0], sizes = [8, 1024], strides = [1, 1]} : vector<8x1152xf32> to vector<8x1024xf32>
    %55 = vector.broadcast %27 : vector<1x1024xf32> to vector<8x1024xf32>
    %56 = arith.mulf %54, %55 : vector<8x1024xf32>
    %57 = tpu.concatenate %31, %32, %36, %40, %42, %46, %50, %52, %56 in 0 : vector<8x1024xf32>, vector<8x1024xf32>, vector<8x1024xf32>, vector<8x1024xf32>, vector<8x1024xf32>, vector<8x1024xf32>, vector<8x1024xf32>, vector<8x1024xf32>, vector<8x1024xf32> -> vector<72x1024xf32>
    %c0_7 = arith.constant 0 : index
    %c0_8 = arith.constant 0 : index
    %58 = vector.load %arg2[%c0_7, %c0_8] : memref<8x72xf32, #tpu.memory_space<vmem>>, vector<8x72xf32>
    %cst = arith.constant dense<0.000000e+00> : vector<8x1024xf32>
    %59 = tpu.matmul %58, %57, %cst {dimension_numbers = #tpu.dot_dimension_numbers<[1], [0], [0], [1], [0, 0, 1, 1], [], []>} : vector<8x72xf32>, vector<72x1024xf32>, vector<8x1024xf32> -> vector<8x1024xf32>
    %cst_9 = arith.constant dense<0.000000e+00> : vector<8xf32>
    %60 = vector.multi_reduction <add>, %59, %cst_9 [1] : vector<8x1024xf32> to vector<8xf32>
    %61 = vector.shape_cast %60 : vector<8xf32> to vector<8x1xf32>
    %cst_10 = arith.constant dense<0.000000e+00> : vector<1xf32>
    %62 = vector.multi_reduction <add>, %61, %cst_10 [0] : vector<8x1xf32> to vector<1xf32>
    %63 = vector.shape_cast %62 : vector<1xf32> to vector<1x1xf32>
    %64 = arith.mulf %59, %59 : vector<8x1024xf32>
    %cst_11 = arith.constant dense<0.000000e+00> : vector<8xf32>
    %65 = vector.multi_reduction <add>, %64, %cst_11 [1] : vector<8x1024xf32> to vector<8xf32>
    %66 = vector.shape_cast %65 : vector<8xf32> to vector<8x1xf32>
    %cst_12 = arith.constant dense<0.000000e+00> : vector<1xf32>
    %67 = vector.multi_reduction <add>, %66, %cst_12 [0] : vector<8x1xf32> to vector<1xf32>
    %68 = vector.shape_cast %67 : vector<1xf32> to vector<1x1xf32>
    %cst_13 = arith.constant 1.22070313E-4 : f32
    %69 = vector.broadcast %cst_13 : f32 to vector<1x1xf32>
    %70 = arith.mulf %63, %69 : vector<1x1xf32>
    %cst_14 = arith.constant 1.22070313E-4 : f32
    %71 = vector.broadcast %cst_14 : f32 to vector<1x1xf32>
    %72 = arith.mulf %68, %71 : vector<1x1xf32>
    %73 = arith.mulf %70, %70 : vector<1x1xf32>
    %74 = arith.subf %72, %73 : vector<1x1xf32>
    %cst_15 = arith.constant 0.000000e+00 : f32
    %75 = vector.broadcast %cst_15 : f32 to vector<1x1xf32>
    %76 = arith.maximumf %74, %75 : vector<1x1xf32>
    %cst_16 = arith.constant 9.99999974E-6 : f32
    %77 = vector.broadcast %cst_16 : f32 to vector<1x1xf32>
    %78 = arith.addf %76, %77 : vector<1x1xf32>
    %79 = math.rsqrt %78 : vector<1x1xf32>
    %c0_17 = arith.constant 0 : index
    %c0_18 = arith.constant 0 : index
    %80 = vector.load %arg3[%c0_17, %c0_18] : memref<8x1xf32, #tpu.memory_space<vmem>>, vector<8x1xf32>
    %81 = vector.broadcast %79 : vector<1x1xf32> to vector<8x1xf32>
    %82 = arith.mulf %80, %81 : vector<8x1xf32>
    %c0_19 = arith.constant 0 : index
    %c0_20 = arith.constant 0 : index
    %c0_21 = arith.constant 0 : index
    %83 = vector.load %arg4[%c0_19, %c0_20, %c0_21] : memref<1x8x1xf32, #tpu.memory_space<vmem>>, vector<1x8x1xf32>
    %84 = vector.shape_cast %83 : vector<1x8x1xf32> to vector<8x1xf32>
    %85 = vector.broadcast %70 : vector<1x1xf32> to vector<8x1xf32>
    %86 = arith.mulf %85, %82 : vector<8x1xf32>
    %87 = arith.subf %84, %86 : vector<8x1xf32>
    %88 = vector.broadcast %82 : vector<8x1xf32> to vector<8x1024xf32>
    %89 = arith.mulf %59, %88 : vector<8x1024xf32>
    %90 = vector.broadcast %87 : vector<8x1xf32> to vector<8x1024xf32>
    %91 = arith.addf %89, %90 : vector<8x1024xf32>
    %92 = arith.addf %42, %91 : vector<8x1024xf32>
    %cst_22 = arith.constant 5.000000e-01 : f32
    %93 = vector.broadcast %cst_22 : f32 to vector<8x1024xf32>
    %94 = arith.mulf %93, %92 : vector<8x1024xf32>
    %cst_23 = arith.constant 0.707106769 : f32
    %95 = vector.broadcast %cst_23 : f32 to vector<8x1024xf32>
    %96 = arith.mulf %92, %95 : vector<8x1024xf32>
    %97 = math.absf %96 : vector<8x1024xf32>
    %cst_24 = arith.constant 0.327591091 : f32
    %98 = vector.broadcast %cst_24 : f32 to vector<8x1024xf32>
    %99 = arith.mulf %98, %97 : vector<8x1024xf32>
    %cst_25 = arith.constant 1.000000e+00 : f32
    %100 = vector.broadcast %cst_25 : f32 to vector<8x1024xf32>
    %101 = arith.addf %100, %99 : vector<8x1024xf32>
    %cst_26 = arith.constant 1.000000e+00 : f32
    %102 = vector.broadcast %cst_26 : f32 to vector<8x1024xf32>
    %103 = arith.divf %102, %101 : vector<8x1024xf32>
    %cst_27 = arith.constant 1.06140542 : f32
    %104 = vector.broadcast %cst_27 : f32 to vector<8x1024xf32>
    %105 = arith.mulf %104, %103 : vector<8x1024xf32>
    %cst_28 = arith.constant 1.45315206 : f32
    %106 = vector.broadcast %cst_28 : f32 to vector<8x1024xf32>
    %107 = arith.subf %105, %106 : vector<8x1024xf32>
    %108 = arith.mulf %107, %103 : vector<8x1024xf32>
    %cst_29 = arith.constant 1.42141378 : f32
    %109 = vector.broadcast %cst_29 : f32 to vector<8x1024xf32>
    %110 = arith.addf %108, %109 : vector<8x1024xf32>
    %111 = arith.mulf %110, %103 : vector<8x1024xf32>
    %cst_30 = arith.constant 0.284496725 : f32
    %112 = vector.broadcast %cst_30 : f32 to vector<8x1024xf32>
    %113 = arith.subf %111, %112 : vector<8x1024xf32>
    %114 = arith.mulf %113, %103 : vector<8x1024xf32>
    %cst_31 = arith.constant 0.254829586 : f32
    %115 = vector.broadcast %cst_31 : f32 to vector<8x1024xf32>
    %116 = arith.addf %114, %115 : vector<8x1024xf32>
    %117 = arith.mulf %116, %103 : vector<8x1024xf32>
    %cst_32 = arith.constant 0.000000e+00 : f32
    %118 = vector.broadcast %cst_32 : f32 to vector<8x1024xf32>
    %119 = arith.subf %118, %97 : vector<8x1024xf32>
    %120 = arith.mulf %119, %97 : vector<8x1024xf32>
    %121 = math.exp %120 : vector<8x1024xf32>
    %122 = arith.mulf %117, %121 : vector<8x1024xf32>
    %cst_33 = arith.constant 1.000000e+00 : f32
    %123 = vector.broadcast %cst_33 : f32 to vector<8x1024xf32>
    %124 = arith.subf %123, %122 : vector<8x1024xf32>
    %cst_34 = arith.constant 0.000000e+00 : f32
    %125 = vector.broadcast %cst_34 : f32 to vector<8x1024xf32>
    %126 = arith.cmpf oge, %96, %125 : vector<8x1024xf32>
    %cst_35 = arith.constant 0.000000e+00 : f32
    %127 = vector.broadcast %cst_35 : f32 to vector<8x1024xf32>
    %128 = arith.subf %127, %124 : vector<8x1024xf32>
    %129 = arith.select %126, %124, %128 : vector<8x1024xi1>, vector<8x1024xf32>
    %cst_36 = arith.constant 1.000000e+00 : f32
    %130 = vector.broadcast %cst_36 : f32 to vector<8x1024xf32>
    %131 = arith.addf %130, %129 : vector<8x1024xf32>
    %132 = arith.mulf %94, %131 : vector<8x1024xf32>
    %133 = arith.truncf %132 : vector<8x1024xf32> to vector<8x1024xbf16>
    %c0_37 = arith.constant 0 : index
    %c0_38 = arith.constant 0 : index
    %c0_39 = arith.constant 0 : index
    %134 = vector.load %arg5[%c0_37, %c0_38, %c0_39] : memref<1x8x1024xbf16, #tpu.memory_space<vmem>>, vector<1x8x1024xbf16>
    %135 = vector.shape_cast %134 : vector<1x8x1024xbf16> to vector<8x1024xbf16>
    %136 = vector.shape_cast %133 : vector<8x1024xbf16> to vector<1x8x1024xbf16>
    tpu.vector_store %arg5[%c0_37, %c0_38, %c0_39], %136 {strides = array<i32>} : memref<1x8x1024xbf16, #tpu.memory_space<vmem>>, vector<1x8x1024xbf16>,
    return
  }
  func.func @transform_0(%arg0: i32) -> (i32, i32, i32) {
    %c0_i32 = arith.constant 0 : i32
    %c0_i32_0 = arith.constant 0 : i32
    %c0_i32_1 = arith.constant 0 : i32
    return %arg0, %c0_i32, %c0_i32_0 : i32, i32, i32
  }
  func.func @transform_1(%arg0: i32) -> (i32, i32) {
    %c0_i32 = arith.constant 0 : i32
    %c0_i32_0 = arith.constant 0 : i32
    %c0_i32_1 = arith.constant 0 : i32
    return %c0_i32, %c0_i32_0 : i32, i32
  }
  func.func @transform_2(%arg0: i32) -> (i32, i32) {
    %c0_i32 = arith.constant 0 : i32
    %c0_i32_0 = arith.constant 0 : i32
    %c0_i32_1 = arith.constant 0 : i32
    return %c0_i32, %c0_i32_0 : i32, i32
  }
  func.func @transform_3(%arg0: i32) -> (i32, i32, i32) {
    %c0_i32 = arith.constant 0 : i32
    %c0_i32_0 = arith.constant 0 : i32
    %c0_i32_1 = arith.constant 0 : i32
    return %arg0, %c0_i32, %c0_i32_0 : i32, i32, i32
  }
  func.func @transform_4(%arg0: i32) -> (i32, i32, i32) {
    %c0_i32 = arith.constant 0 : i32
    %c0_i32_0 = arith.constant 0 : i32
    %c0_i32_1 = arith.constant 0 : i32
    return %arg0, %c0_i32, %c0_i32_0 : i32, i32, i32
  }
}

module attributes {stable_mosaic.version = 11 : i64} {
  func.func @kernel(%arg0: i32, %arg1: memref<1x8x1152xbf16, #tpu.memory_space<vmem>>, %arg2: memref<4x72xf32, #tpu.memory_space<vmem>>, %arg3: memref<4x1xf32, #tpu.memory_space<vmem>>, %arg4: memref<1x4x1xf32, #tpu.memory_space<vmem>>, %arg5: memref<1x4x1024xf32, #tpu.memory_space<vmem>>) attributes {dimension_semantics = [#tpu.dimension_semantics<parallel>], iteration_bounds = array<i64: 2>, scalar_prefetch = 0 : i64, scratch_operands = 0 : i64, tpu.core_type = #tpu.core_type<tc>, window_params = [{transform_indices = @transform_0, window_bounds = array<i64: 1, 8, 1152>}, {pipeline_mode = #tpu.pipeline_mode<synchronous>, transform_indices = @transform_1, window_bounds = array<i64: 4, 72>}, {pipeline_mode = #tpu.pipeline_mode<synchronous>, transform_indices = @transform_2, window_bounds = array<i64: 4, 1>}, {transform_indices = @transform_3, window_bounds = array<i64: 1, 4, 1>}, {transform_indices = @transform_4, window_bounds = array<i64: 1, 4, 1024>}]} {
    %c0 = arith.constant 0 : index
    %c0_0 = arith.constant 0 : index
    %c0_1 = arith.constant 0 : index
    %0 = vector.load %arg1[%c0, %c0_0, %c0_1] : memref<1x8x1152xbf16, #tpu.memory_space<vmem>>, vector<1x8x1152xbf16>
    %1 = vector.shape_cast %0 : vector<1x8x1152xbf16> to vector<8x1152xbf16>
    %2 = arith.extf %1 : vector<8x1152xbf16> to vector<8x1152xf32>
    %3 = tpu.iota {dimensions = array<i32: 1>} : vector<1x1024xi32>
    %c32_i32 = arith.constant 32 : i32
    %c0_i32 = arith.constant 0 : i32
    %4 = arith.cmpi eq, %c32_i32, %c0_i32 : i32
    %c1_i32 = arith.constant 1 : i32
    %5 = arith.select %4, %c1_i32, %c32_i32 : i32
    %6 = vector.broadcast %5 : i32 to vector<1x1024xi32>
    %7 = arith.remsi %3, %6 : vector<1x1024xi32>
    %c0_i32_2 = arith.constant 0 : i32
    %8 = vector.broadcast %c0_i32_2 : i32 to vector<1x1024xi32>
    %9 = arith.cmpi ne, %7, %8 : vector<1x1024xi32>
    %c0_i32_3 = arith.constant 0 : i32
    %10 = vector.broadcast %c0_i32_3 : i32 to vector<1x1024xi32>
    %11 = arith.cmpi slt, %7, %10 : vector<1x1024xi32>
    %c0_i32_4 = arith.constant 0 : i32
    %12 = arith.cmpi slt, %5, %c0_i32_4 : i32
    %13 = vector.broadcast %12 : i1 to vector<1x1024xi1>
    %14 = vector.broadcast %13 : vector<1x1024xi1> to vector<1x1024xi1>
    %15 = arith.xori %11, %14 : vector<1x1024xi1>
    %16 = arith.andi %15, %9 : vector<1x1024xi1>
    %17 = vector.broadcast %5 : i32 to vector<1x1024xi32>
    %18 = arith.addi %7, %17 : vector<1x1024xi32>
    %19 = arith.select %16, %18, %7 : vector<1x1024xi1>, vector<1x1024xi32>
    %c0_i32_5 = arith.constant 0 : i32
    %20 = vector.broadcast %c0_i32_5 : i32 to vector<1x1024xi32>
    %21 = arith.cmpi ne, %19, %20 : vector<1x1024xi32>
    %22 = arith.extui %21 : vector<1x1024xi1> to vector<1x1024xi32>
    %23 = arith.sitofp %22 : vector<1x1024xi32> to vector<1x1024xf32>
    %c31_i32 = arith.constant 31 : i32
    %24 = vector.broadcast %c31_i32 : i32 to vector<1x1024xi32>
    %25 = arith.cmpi ne, %19, %24 : vector<1x1024xi32>
    %26 = arith.extui %25 : vector<1x1024xi1> to vector<1x1024xi32>
    %27 = arith.sitofp %26 : vector<1x1024xi32> to vector<1x1024xf32>
    %c1_i32_6 = arith.constant 1 : i32
    %28 = tpu.dynamic_rotate %2 by %c1_i32_6 dim 1 : vector<8x1152xf32>, i32 -> vector<8x1152xf32>
    %29 = vector.extract_strided_slice %28 {offsets = [0, 0], sizes = [8, 1024], strides = [1, 1]} : vector<8x1152xf32> to vector<8x1024xf32>
    %30 = vector.broadcast %23 : vector<1x1024xf32> to vector<8x1024xf32>
    %31 = arith.mulf %29, %30 : vector<8x1024xf32>
    %32 = vector.extract_strided_slice %2 {offsets = [0, 0], sizes = [8, 1024], strides = [1, 1]} : vector<8x1152xf32> to vector<8x1024xf32>
    %c1151_i32 = arith.constant 1151 : i32
    %33 = tpu.dynamic_rotate %2 by %c1151_i32 dim 1 : vector<8x1152xf32>, i32 -> vector<8x1152xf32>
    %34 = vector.extract_strided_slice %33 {offsets = [0, 0], sizes = [8, 1024], strides = [1, 1]} : vector<8x1152xf32> to vector<8x1024xf32>
    %35 = vector.broadcast %27 : vector<1x1024xf32> to vector<8x1024xf32>
    %36 = arith.mulf %34, %35 : vector<8x1024xf32>
    %c1121_i32 = arith.constant 1121 : i32
    %37 = tpu.dynamic_rotate %2 by %c1121_i32 dim 1 : vector<8x1152xf32>, i32 -> vector<8x1152xf32>
    %38 = vector.extract_strided_slice %37 {offsets = [0, 0], sizes = [8, 1024], strides = [1, 1]} : vector<8x1152xf32> to vector<8x1024xf32>
    %39 = vector.broadcast %23 : vector<1x1024xf32> to vector<8x1024xf32>
    %40 = arith.mulf %38, %39 : vector<8x1024xf32>
    %c1120_i32 = arith.constant 1120 : i32
    %41 = tpu.dynamic_rotate %2 by %c1120_i32 dim 1 : vector<8x1152xf32>, i32 -> vector<8x1152xf32>
    %42 = vector.extract_strided_slice %41 {offsets = [0, 0], sizes = [8, 1024], strides = [1, 1]} : vector<8x1152xf32> to vector<8x1024xf32>
    %c1119_i32 = arith.constant 1119 : i32
    %43 = tpu.dynamic_rotate %2 by %c1119_i32 dim 1 : vector<8x1152xf32>, i32 -> vector<8x1152xf32>
    %44 = vector.extract_strided_slice %43 {offsets = [0, 0], sizes = [8, 1024], strides = [1, 1]} : vector<8x1152xf32> to vector<8x1024xf32>
    %45 = vector.broadcast %27 : vector<1x1024xf32> to vector<8x1024xf32>
    %46 = arith.mulf %44, %45 : vector<8x1024xf32>
    %c1089_i32 = arith.constant 1089 : i32
    %47 = tpu.dynamic_rotate %2 by %c1089_i32 dim 1 : vector<8x1152xf32>, i32 -> vector<8x1152xf32>
    %48 = vector.extract_strided_slice %47 {offsets = [0, 0], sizes = [8, 1024], strides = [1, 1]} : vector<8x1152xf32> to vector<8x1024xf32>
    %49 = vector.broadcast %23 : vector<1x1024xf32> to vector<8x1024xf32>
    %50 = arith.mulf %48, %49 : vector<8x1024xf32>
    %c1088_i32 = arith.constant 1088 : i32
    %51 = tpu.dynamic_rotate %2 by %c1088_i32 dim 1 : vector<8x1152xf32>, i32 -> vector<8x1152xf32>
    %52 = vector.extract_strided_slice %51 {offsets = [0, 0], sizes = [8, 1024], strides = [1, 1]} : vector<8x1152xf32> to vector<8x1024xf32>
    %c1087_i32 = arith.constant 1087 : i32
    %53 = tpu.dynamic_rotate %2 by %c1087_i32 dim 1 : vector<8x1152xf32>, i32 -> vector<8x1152xf32>
    %54 = vector.extract_strided_slice %53 {offsets = [0, 0], sizes = [8, 1024], strides = [1, 1]} : vector<8x1152xf32> to vector<8x1024xf32>
    %55 = vector.broadcast %27 : vector<1x1024xf32> to vector<8x1024xf32>
    %56 = arith.mulf %54, %55 : vector<8x1024xf32>
    %57 = tpu.concatenate %31, %32, %36, %40, %42, %46, %50, %52, %56 in 0 : vector<8x1024xf32>, vector<8x1024xf32>, vector<8x1024xf32>, vector<8x1024xf32>, vector<8x1024xf32>, vector<8x1024xf32>, vector<8x1024xf32>, vector<8x1024xf32>, vector<8x1024xf32> -> vector<72x1024xf32>
    %c0_7 = arith.constant 0 : index
    %c0_8 = arith.constant 0 : index
    %58 = vector.load %arg2[%c0_7, %c0_8] : memref<4x72xf32, #tpu.memory_space<vmem>>, vector<4x72xf32>
    %cst = arith.constant dense<0.000000e+00> : vector<4x1024xf32>
    %59 = tpu.matmul %58, %57, %cst {dimension_numbers = #tpu.dot_dimension_numbers<[1], [0], [0], [1], [0, 0, 1, 1], [], []>} : vector<4x72xf32>, vector<72x1024xf32>, vector<4x1024xf32> -> vector<4x1024xf32>
    %cst_9 = arith.constant dense<0.000000e+00> : vector<4xf32>
    %60 = vector.multi_reduction <add>, %59, %cst_9 [1] : vector<4x1024xf32> to vector<4xf32>
    %61 = vector.shape_cast %60 : vector<4xf32> to vector<4x1xf32>
    %cst_10 = arith.constant dense<0.000000e+00> : vector<1xf32>
    %62 = vector.multi_reduction <add>, %61, %cst_10 [0] : vector<4x1xf32> to vector<1xf32>
    %63 = vector.shape_cast %62 : vector<1xf32> to vector<1x1xf32>
    %64 = arith.mulf %59, %59 : vector<4x1024xf32>
    %cst_11 = arith.constant dense<0.000000e+00> : vector<4xf32>
    %65 = vector.multi_reduction <add>, %64, %cst_11 [1] : vector<4x1024xf32> to vector<4xf32>
    %66 = vector.shape_cast %65 : vector<4xf32> to vector<4x1xf32>
    %cst_12 = arith.constant dense<0.000000e+00> : vector<1xf32>
    %67 = vector.multi_reduction <add>, %66, %cst_12 [0] : vector<4x1xf32> to vector<1xf32>
    %68 = vector.shape_cast %67 : vector<1xf32> to vector<1x1xf32>
    %cst_13 = arith.constant 2.44140625E-4 : f32
    %69 = vector.broadcast %cst_13 : f32 to vector<1x1xf32>
    %70 = arith.mulf %63, %69 : vector<1x1xf32>
    %cst_14 = arith.constant 2.44140625E-4 : f32
    %71 = vector.broadcast %cst_14 : f32 to vector<1x1xf32>
    %72 = arith.mulf %68, %71 : vector<1x1xf32>
    %73 = arith.mulf %70, %70 : vector<1x1xf32>
    %74 = arith.subf %72, %73 : vector<1x1xf32>
    %cst_15 = arith.constant 0.000000e+00 : f32
    %75 = vector.broadcast %cst_15 : f32 to vector<1x1xf32>
    %76 = arith.maximumf %74, %75 : vector<1x1xf32>
    %cst_16 = arith.constant 9.99999974E-6 : f32
    %77 = vector.broadcast %cst_16 : f32 to vector<1x1xf32>
    %78 = arith.addf %76, %77 : vector<1x1xf32>
    %79 = math.rsqrt %78 : vector<1x1xf32>
    %c0_17 = arith.constant 0 : index
    %c0_18 = arith.constant 0 : index
    %80 = vector.load %arg3[%c0_17, %c0_18] : memref<4x1xf32, #tpu.memory_space<vmem>>, vector<4x1xf32>
    %81 = vector.broadcast %79 : vector<1x1xf32> to vector<4x1xf32>
    %82 = arith.mulf %80, %81 : vector<4x1xf32>
    %c0_19 = arith.constant 0 : index
    %c0_20 = arith.constant 0 : index
    %c0_21 = arith.constant 0 : index
    %83 = vector.load %arg4[%c0_19, %c0_20, %c0_21] : memref<1x4x1xf32, #tpu.memory_space<vmem>>, vector<1x4x1xf32>
    %84 = vector.shape_cast %83 : vector<1x4x1xf32> to vector<4x1xf32>
    %85 = vector.broadcast %70 : vector<1x1xf32> to vector<4x1xf32>
    %86 = arith.mulf %85, %82 : vector<4x1xf32>
    %87 = arith.subf %84, %86 : vector<4x1xf32>
    %88 = vector.broadcast %82 : vector<4x1xf32> to vector<4x1024xf32>
    %89 = arith.mulf %59, %88 : vector<4x1024xf32>
    %90 = vector.broadcast %87 : vector<4x1xf32> to vector<4x1024xf32>
    %91 = arith.addf %89, %90 : vector<4x1024xf32>
    %c0_22 = arith.constant 0 : index
    %c0_23 = arith.constant 0 : index
    %c0_24 = arith.constant 0 : index
    %92 = vector.load %arg5[%c0_22, %c0_23, %c0_24] : memref<1x4x1024xf32, #tpu.memory_space<vmem>>, vector<1x4x1024xf32>
    %93 = vector.shape_cast %92 : vector<1x4x1024xf32> to vector<4x1024xf32>
    %94 = vector.shape_cast %91 : vector<4x1024xf32> to vector<1x4x1024xf32>
    tpu.vector_store %arg5[%c0_22, %c0_23, %c0_24], %94 {strides = array<i32>} : memref<1x4x1024xf32, #tpu.memory_space<vmem>>, vector<1x4x1024xf32>,
    return
  }
  func.func @transform_0(%arg0: i32) -> (i32, i32, i32) {
    %c0_i32 = arith.constant 0 : i32
    %c0_i32_0 = arith.constant 0 : i32
    %c0_i32_1 = arith.constant 0 : i32
    return %arg0, %c0_i32, %c0_i32_0 : i32, i32, i32
  }
  func.func @transform_1(%arg0: i32) -> (i32, i32) {
    %c0_i32 = arith.constant 0 : i32
    %c0_i32_0 = arith.constant 0 : i32
    %c0_i32_1 = arith.constant 0 : i32
    return %c0_i32, %c0_i32_0 : i32, i32
  }
  func.func @transform_2(%arg0: i32) -> (i32, i32) {
    %c0_i32 = arith.constant 0 : i32
    %c0_i32_0 = arith.constant 0 : i32
    %c0_i32_1 = arith.constant 0 : i32
    return %c0_i32, %c0_i32_0 : i32, i32
  }
  func.func @transform_3(%arg0: i32) -> (i32, i32, i32) {
    %c0_i32 = arith.constant 0 : i32
    %c0_i32_0 = arith.constant 0 : i32
    %c0_i32_1 = arith.constant 0 : i32
    return %arg0, %c0_i32, %c0_i32_0 : i32, i32, i32
  }
  func.func @transform_4(%arg0: i32) -> (i32, i32, i32) {
    %c0_i32 = arith.constant 0 : i32
    %c0_i32_0 = arith.constant 0 : i32
    %c0_i32_1 = arith.constant 0 : i32
    return %arg0, %c0_i32, %c0_i32_0 : i32, i32, i32
  }
}

</mosaic_0001>

<llo_original>
// kernel: up_forward.3
$region0: #{up_forward.3}
  #allocation0 [shape = 'u32[]', space=smem, size = 0x4, offset = 0x4, fixed_abs, tag = 'smem constant byte address 0x4 - core index']
  #allocation1 [shape = 'u32[144,128]{1,0:T(1,128)}', space=vmem, size = 0x12000, scoped, tag = 'internal scratch']
  %s0 = inlined_call_operand.vmem [shape: bf16[2,8,1152], index: 0, kind: input, shape index: {}]
  %s1 = inlined_call_operand.vmem [shape: f32[4,72], index: 1, kind: input, shape index: {}]
  %s2 = inlined_call_operand.vmem [shape: f32[4,1], index: 2, kind: input, shape index: {}]
  %s3 = inlined_call_operand.vmem [shape: f32[2,4,1], index: 3, kind: input, shape index: {}]
  %s4 = inlined_call_operand.vmem [shape: f32[2,4,1024], index: 4, kind: output, shape index: {}]
  %s5 = sld [smem:[#allocation0]]
  $region49: #{up_forward.3} parent=0
    _
  %s7 = ssub.s32 1, %s5
  %s8 = scalar_select 0, %s7, %s5
  loop: start=0, step=1, limit=4
  $region2: #{up_forward.3} parent=0 // loop_pre_header
    _
  $region3: #{up_forward.3} parent=0 // loop_header
    %s10 = sphi 0, %s14
    %p11 = scmp.ge.s32.totalorder %s10, 4
    %s20 = sphi 0, %s22
    %s23 = sphi 0, %s20
    %s24 = sphi 0, %s23
    %s40 = sphi 0, %s24
    %s44 = sphi 0, %s44
    %s46 = sphi 0, %s44
    %s47 = sphi 0, %s46
    %s61 = sphi 0, %s47
    %s65 = sphi 0, %s65
    %s67 = sphi 0, %s65
    %s68 = sphi 0, %s67
    %s82 = sphi 0, %s68
    %s88 = sphi 0, %s90
    %s91 = sphi 0, %s88
    %s92 = sphi 0, %s91
    %s108 = sphi 0, %s92
    %s114 = sphi 0, %s116
    %s117 = sphi 0, %s114
    %s118 = sphi 0, %s117
    %s134 = sphi 0, %s118
  $region4: #{up_forward.3} parent=0 // loop_header_branch
    %13 = sbr.rel (%p11) target = $region8
  $region5: #{up_forward.3} parent=0 // loop_body
    %s15 = ssub.s32 %s10, 1
    %s16 = ssub.s32 %s10, 2
    %s17 = sadd.s32 %s10, 1
    %s18 = ssub.s32 %s10, %s17
    %p19 = scmp.eq.s32.totalorder %s18, 0
    %s21 = sadd.s32 %s20, 1
    %s22 = scalar_select %p19, %s20, %s21
    %p25 = pneg %p19
    %p26 = scmp.eq.s32.totalorder %s10, 1
    %p27 = por %p25, %p26
    %p28 = scmp.ne.s32.totalorder %s20, %s23
    %p29 = scmp.eq.s32.totalorder %s10, 0
    %p30 = por %p28, %p29
    %p31 = scmp.ne.s32.totalorder %s20, %s23
    %p32 = scmp.eq.s32.totalorder %s15, 1
    %p33 = por %p31, %p32
    %p34 = scmp.ne.s32.totalorder %s23, %s24
    %p35 = scmp.eq.s32.totalorder %s15, 0
    %p36 = por %p34, %p35
    %p37 = scmp.ne.s32.totalorder %s23, %s24
    %p38 = scmp.eq.s32.totalorder %s16, 1
    %p39 = por %p37, %p38
    %p41 = scmp.ne.s32.totalorder %s24, %s40
    %p42 = scmp.eq.s32.totalorder %s16, 0
    %p43 = por %p41, %p42
    %s45 = sadd.s32 %s44, 1
    %p48 = scmp.eq.s32.totalorder %s10, 1
    %p49 = scmp.ne.s32.totalorder %s44, %s46
    %p50 = scmp.eq.s32.totalorder %s10, 0
    %p51 = por %p49, %p50
    %p52 = scmp.ne.s32.totalorder %s44, %s46
    %p53 = scmp.eq.s32.totalorder %s15, 1
    %p54 = por %p52, %p53
    %p55 = scmp.ne.s32.totalorder %s46, %s47
    %p56 = scmp.eq.s32.totalorder %s15, 0
    %p57 = por %p55, %p56
    %p58 = scmp.ne.s32.totalorder %s46, %s47
    %p59 = scmp.eq.s32.totalorder %s16, 1
    %p60 = por %p58, %p59
    %p62 = scmp.ne.s32.totalorder %s47, %s61
    %p63 = scmp.eq.s32.totalorder %s16, 0
    %p64 = por %p62, %p63
    %s66 = sadd.s32 %s65, 1
    %p69 = scmp.eq.s32.totalorder %s10, 1
    %p70 = scmp.ne.s32.totalorder %s65, %s67
    %p71 = scmp.eq.s32.totalorder %s10, 0
    %p72 = por %p70, %p71
    %p73 = scmp.ne.s32.totalorder %s65, %s67
    %p74 = scmp.eq.s32.totalorder %s15, 1
    %p75 = por %p73, %p74
    %p76 = scmp.ne.s32.totalorder %s67, %s68
    %p77 = scmp.eq.s32.totalorder %s15, 0
    %p78 = por %p76, %p77
    %p79 = scmp.ne.s32.totalorder %s67, %s68
    %p80 = scmp.eq.s32.totalorder %s16, 1
    %p81 = por %p79, %p80
    %p83 = scmp.ne.s32.totalorder %s68, %s82
    %p84 = scmp.eq.s32.totalorder %s16, 0
    %p85 = por %p83, %p84
    %s86 = ssub.s32 %s10, %s17
    %p87 = scmp.eq.s32.totalorder %s86, 0
    %s89 = sadd.s32 %s88, 1
    %s90 = scalar_select %p87, %s88, %s89
    %p93 = pneg %p87
    %p94 = scmp.eq.s32.totalorder %s10, 1
    %p95 = por %p93, %p94
    %p96 = scmp.ne.s32.totalorder %s88, %s91
    %p97 = scmp.eq.s32.totalorder %s10, 0
    %p98 = por %p96, %p97
    %p99 = scmp.ne.s32.totalorder %s88, %s91
    %p100 = scmp.eq.s32.totalorder %s15, 1
    %p101 = por %p99, %p100
    %p102 = scmp.ne.s32.totalorder %s91, %s92
    %p103 = scmp.eq.s32.totalorder %s15, 0
    %p104 = por %p102, %p103
    %p105 = scmp.ne.s32.totalorder %s91, %s92
    %p106 = scmp.eq.s32.totalorder %s16, 1
    %p107 = por %p105, %p106
    %p109 = scmp.ne.s32.totalorder %s92, %s108
    %p110 = scmp.eq.s32.totalorder %s16, 0
    %p111 = por %p109, %p110
    %s112 = ssub.s32 %s10, %s17
    %p113 = scmp.eq.s32.totalorder %s112, 0
    %s115 = sadd.s32 %s114, 1
    %s116 = scalar_select %p113, %s114, %s115
    %p119 = pneg %p113
    %p120 = scmp.eq.s32.totalorder %s10, 1
    %p121 = por %p119, %p120
    %p122 = scmp.ne.s32.totalorder %s114, %s117
    %p123 = scmp.eq.s32.totalorder %s10, 0
    %p124 = por %p122, %p123
    %p125 = scmp.ne.s32.totalorder %s114, %s117
    %p126 = scmp.eq.s32.totalorder %s15, 1
    %p127 = por %p125, %p126
    %p128 = scmp.ne.s32.totalorder %s117, %s118
    %p129 = scmp.eq.s32.totalorder %s15, 0
    %p130 = por %p128, %p129
    %p131 = scmp.ne.s32.totalorder %s117, %s118
    %p132 = scmp.eq.s32.totalorder %s16, 1
    %p133 = por %p131, %p132
    %p135 = scmp.ne.s32.totalorder %s118, %s134
    %p136 = scmp.eq.s32.totalorder %s16, 0
    %p137 = por %p135, %p136
    %p138 = scmp.le.s32.totalorder 1, %s10
    %p139 = scmp.lt.s32.totalorder %s10, 3
    %p140 = pnand %p138, %p139
    %p141 = pneg %p140
    // Predicated region
    $region9: #{up_forward.3} parent=5 // pred_check
      _
    $region10: #{up_forward.3} parent=5 // pred_check_branch
      %143 = sbr.rel (%p140) target = $region12
    $region11: #{up_forward.3} parent=5 // pred_region
      %s144 = ssub.s32 %s10, 1
      // Predicated region
      $region13: #{up_forward.3} parent=11 // pred_check
        %p145 = pneg %p57
      $region14: #{up_forward.3} parent=11 // pred_check_branch
        %147 = sbr.rel (%p145) target = $region16
      $region15: #{up_forward.3} parent=11 // pred_region
        _
      $region16: #{up_forward.3} parent=11 // pred_fallthru
        _
      // Predicated region
      $region17: #{up_forward.3} parent=11 // pred_check
        %p148 = pneg %p78
      $region18: #{up_forward.3} parent=11 // pred_check_branch
        %150 = sbr.rel (%p148) target = $region20
      $region19: #{up_forward.3} parent=11 // pred_region
        _
      $region20: #{up_forward.3} parent=11 // pred_fallthru
        _
    $region12: #{up_forward.3} parent=5 // pred_fallthru
      _
    %p151 = scmp.lt.s32.totalorder %s10, 2
    // Predicated region
    $region21: #{up_forward.3} parent=5 // pred_check
      %p152 = pneg %p151
    $region22: #{up_forward.3} parent=5 // pred_check_branch
      %154 = sbr.rel (%p152) target = $region24
    $region23: #{up_forward.3} parent=5 // pred_region
      // Predicated region
      $region25: #{up_forward.3} parent=23 // pred_check
        %p155 = pneg %p30
      $region26: #{up_forward.3} parent=23 // pred_check_branch
        %157 = sbr.rel (%p155) target = $region28
      $region27: #{up_forward.3} parent=23 // pred_region
        %p158 = scmp.lt.s32.totalorder %s10, 1
        %s159 = scalar_select %p158, %s10, 1
        %s160 = smul.addr %s159, 9
        %s161 = smul.addr %s160, 4
        %s162 = scalar_lea.vmem %s0, %s161
      $region28: #{up_forward.3} parent=23 // pred_fallthru
        _
      // Predicated region
      $region29: #{up_forward.3} parent=23 // pred_check
        %p163 = pneg %p98
      $region30: #{up_forward.3} parent=23 // pred_check_branch
        %165 = sbr.rel (%p163) target = $region32
      $region31: #{up_forward.3} parent=23 // pred_region
        %p166 = scmp.lt.s32.totalorder %s10, 1
        %s167 = scalar_select %p166, %s10, 1
        %s168 = smul.addr %s167, 4
        %s169 = scalar_lea.vmem %s3, %s168
      $region32: #{up_forward.3} parent=23 // pred_fallthru
        _
    $region24: #{up_forward.3} parent=5 // pred_fallthru
      _
    %p170 = scmp.le.s32.totalorder 1, %s10
    %p171 = scmp.lt.s32.totalorder %s10, 3
    %p172 = pnand %p170, %p171
    %p173 = pneg %p172
    // Predicated region
    $region33: #{up_forward.3} parent=5 // pred_check
      _
    $region34: #{up_forward.3} parent=5 // pred_check_branch
      %175 = sbr.rel (%p172) target = $region36
    $region35: #{up_forward.3} parent=5 // pred_region
      %s176 = ssub.s32 %s10, 1
      %p177 = scmp.lt.s32.totalorder %s15, 1
      %s178 = scalar_select %p177, %s15, 1
      %s179 = smul.addr %s178, 9
      %s180 = smul.addr %s179, 4
      %s181 = scalar_lea.vmem %s0, %s180
      %p182 = pneg %p36
      %p183 = pneg %p33
      %p184 = pneg %p57
      %p185 = pneg %p54
      %p186 = pneg %p78
      %p187 = pneg %p75
      %p188 = scmp.lt.s32.totalorder %s15, 1
      %s189 = scalar_select %p188, %s15, 1
      %s190 = smul.addr %s189, 4
      %s191 = scalar_lea.vmem %s3, %s190
      %p192 = pneg %p104
      %p193 = pneg %p101
      %p194 = pneg %p130
      %p195 = pneg %p127
      %p196 = scmp.lt.s32.totalorder %s15, 1
      %s197 = scalar_select %p196, %s15, 1
      %s198 = smul.addr %s197, 8
      %s199 = smul.addr %s198, 4
      %s200 = scalar_lea.vmem %s4, %s199
      %p201 = scmp.lt.s32.totalorder %s15, 1
      %s202 = scalar_select %p201, %s15, 1
      %s203 = smul.addr %s202, 9
      %s204 = smul.addr %s203, 4
      %s205 = scalar_lea.vmem %s0, %s204
      %p206 = scmp.lt.s32.totalorder %s15, 1
      %s207 = scalar_select %p206, %s15, 1
      %s208 = smul.addr %s207, 4
      %s209 = scalar_lea.vmem %s3, %s208
      %p210 = scmp.lt.s32.totalorder %s15, 1
      %s211 = scalar_select %p210, %s15, 1
      %s212 = smul.addr %s211, 8
      %s213 = smul.addr %s212, 4
      %s214 = scalar_lea.vmem %s4, %s213
      %v215 = vld [vmem:[%s205] sm:$0xff]
      %v216 = vld [vmem:[%s205 + $0x8] sm:$0xff]
      %v217 = vld [vmem:[%s205 + $0x10] sm:$0xff]
      %v218 = vld [vmem:[%s205 + $0x18] sm:$0xff]
      %v219 = vld [vmem:[%s205 + $0x20] sm:$0xf]
      %v220 = vunpack.c.l.bf16 %v215
      %v221 = vunpack.c.h.bf16 %v215
      %v222 = vunpack.c.l.bf16 %v216
      %v223 = vunpack.c.h.bf16 %v216
      %v224 = vunpack.c.l.bf16 %v217
      %v225 = vunpack.c.h.bf16 %v217
      %v226 = vunpack.c.l.bf16 %v218
      %v227 = vunpack.c.h.bf16 %v218
      %v228 = vunpack.c.l.bf16 %v219
      %v229 = vlaneseq
      %v230 = vand.u32 %v229, 127
      %v231 = vadd.s32 %v230, 128
      %v232 = vadd.s32 %v230, 256
      %v233 = vadd.s32 %v230, 384
      %v234 = vadd.s32 %v230, 512
      %v235 = vadd.s32 %v230, 640
      %v236 = vadd.s32 %v230, 768
      %v237 = vadd.s32 %v230, 896
      %vm238 = vcmp.lt.s32.totalorder %v230, 0
      %v239 = vsub.s32 0, %v230
      %v240 = vsel %vm238, %v239, %v230
      %v241 = vshrl.u32 %v240, 5
      %v242 = vand.u32 %v240, 31
      %v243 = vsub.s32 0, %v242
      %v244 = vsel %vm238, %v243, %v242
      %vm245 = vcmp.lt.s32.totalorder %v231, 0
      %v246 = vsub.s32 0, %v231
      %v247 = vsel %vm245, %v246, %v231
      %v248 = vshrl.u32 %v247, 5
      %v249 = vand.u32 %v247, 31
      %v250 = vsub.s32 0, %v249
      %v251 = vsel %vm245, %v250, %v249
      %vm252 = vcmp.lt.s32.totalorder %v232, 0
      %v253 = vsub.s32 0, %v232
      %v254 = vsel %vm252, %v253, %v232
      %v255 = vshrl.u32 %v254, 5
      %v256 = vand.u32 %v254, 31
      %v257 = vsub.s32 0, %v256
      %v258 = vsel %vm252, %v257, %v256
      %vm259 = vcmp.lt.s32.totalorder %v233, 0
      %v260 = vsub.s32 0, %v233
      %v261 = vsel %vm259, %v260, %v233
      %v262 = vshrl.u32 %v261, 5
      %v263 = vand.u32 %v261, 31
      %v264 = vsub.s32 0, %v263
      %v265 = vsel %vm259, %v264, %v263
      %vm266 = vcmp.lt.s32.totalorder %v234, 0
      %v267 = vsub.s32 0, %v234
      %v268 = vsel %vm266, %v267, %v234
      %v269 = vshrl.u32 %v268, 5
      %v270 = vand.u32 %v268, 31
      %v271 = vsub.s32 0, %v270
      %v272 = vsel %vm266, %v271, %v270
      %vm273 = vcmp.lt.s32.totalorder %v235, 0
      %v274 = vsub.s32 0, %v235
      %v275 = vsel %vm273, %v274, %v235
      %v276 = vshrl.u32 %v275, 5
      %v277 = vand.u32 %v275, 31
      %v278 = vsub.s32 0, %v277
      %v279 = vsel %vm273, %v278, %v277
      %vm280 = vcmp.lt.s32.totalorder %v236, 0
      %v281 = vsub.s32 0, %v236
      %v282 = vsel %vm280, %v281, %v236
      %v283 = vshrl.u32 %v282, 5
      %v284 = vand.u32 %v282, 31
      %v285 = vsub.s32 0, %v284
      %v286 = vsel %vm280, %v285, %v284
      %vm287 = vcmp.lt.s32.totalorder %v237, 0
      %v288 = vsub.s32 0, %v237
      %v289 = vsel %vm287, %v288, %v237
      %v290 = vshrl.u32 %v289, 5
      %v291 = vand.u32 %v289, 31
      %v292 = vsub.s32 0, %v291
      %v293 = vsel %vm287, %v292, %v291
      %vm294 = vcmp.ne.s32.totalorder %v244, 0
      %vm295 = vcmp.ne.s32.totalorder %v251, 0
      %vm296 = vcmp.ne.s32.totalorder %v258, 0
      %vm297 = vcmp.ne.s32.totalorder %v265, 0
      %vm298 = vcmp.ne.s32.totalorder %v272, 0
      %vm299 = vcmp.ne.s32.totalorder %v279, 0
      %vm300 = vcmp.ne.s32.totalorder %v286, 0
      %vm301 = vcmp.ne.s32.totalorder %v293, 0
      %vm302 = vcmp.lt.s32.totalorder %v244, 0
      %vm303 = vcmp.lt.s32.totalorder %v251, 0
      %vm304 = vcmp.lt.s32.totalorder %v258, 0
      %vm305 = vcmp.lt.s32.totalorder %v265, 0
      %vm306 = vcmp.lt.s32.totalorder %v272, 0
      %vm307 = vcmp.lt.s32.totalorder %v279, 0
      %vm308 = vcmp.lt.s32.totalorder %v286, 0
      %vm309 = vcmp.lt.s32.totalorder %v293, 0
      %vm310 = vmand %vm302, %vm294
      %vm311 = vmand %vm303, %vm295
      %vm312 = vmand %vm304, %vm296
      %vm313 = vmand %vm305, %vm297
      %vm314 = vmand %vm306, %vm298
      %vm315 = vmand %vm307, %vm299
      %vm316 = vmand %vm308, %vm300
      %vm317 = vmand %vm309, %vm301
      %v318 = vadd.s32 %v244, 32
      %v319 = vadd.s32 %v251, 32
      %v320 = vadd.s32 %v258, 32
      %v321 = vadd.s32 %v265, 32
      %v322 = vadd.s32 %v272, 32
      %v323 = vadd.s32 %v279, 32
      %v324 = vadd.s32 %v286, 32
      %v325 = vadd.s32 %v293, 32
      %v326 = vsel %vm310, %v318, %v244
      %v327 = vsel %vm311, %v319, %v251
      %v328 = vsel %vm312, %v320, %v258
      %v329 = vsel %vm313, %v321, %v265
      %v330 = vsel %vm314, %v322, %v272
      %v331 = vsel %vm315, %v323, %v279
      %v332 = vsel %vm316, %v324, %v286
      %v333 = vsel %vm317, %v325, %v293
      %vm334 = vcmp.ne.s32.totalorder %v326, 0
      %vm335 = vcmp.ne.s32.totalorder %v327, 0
      %vm336 = vcmp.ne.s32.totalorder %v328, 0
      %vm337 = vcmp.ne.s32.totalorder %v329, 0
      %vm338 = vcmp.ne.s32.totalorder %v330, 0
      %vm339 = vcmp.ne.s32.totalorder %v331, 0
      %vm340 = vcmp.ne.s32.totalorder %v332, 0
      %vm341 = vcmp.ne.s32.totalorder %v333, 0
      %v342 = vsel %vm334, 1, 0
      %v343 = vsel %vm335, 1, 0
      %v344 = vsel %vm336, 1, 0
      %v345 = vsel %vm337, 1, 0
      %v346 = vsel %vm338, 1, 0
      %v347 = vsel %vm339, 1, 0
      %v348 = vsel %vm340, 1, 0
      %v349 = vsel %vm341, 1, 0
      %v350 = vcvt.s32.f32 %v342
      %v351 = vcvt.s32.f32 %v343
      %v352 = vcvt.s32.f32 %v344
      %v353 = vcvt.s32.f32 %v345
      %v354 = vcvt.s32.f32 %v346
      %v355 = vcvt.s32.f32 %v347
      %v356 = vcvt.s32.f32 %v348
      %v357 = vcvt.s32.f32 %v349
      %vm358 = vcmp.ne.s32.totalorder %v326, 31
      %vm359 = vcmp.ne.s32.totalorder %v327, 31
      %vm360 = vcmp.ne.s32.totalorder %v328, 31
      %vm361 = vcmp.ne.s32.totalorder %v329, 31
      %vm362 = vcmp.ne.s32.totalorder %v330, 31
      %vm363 = vcmp.ne.s32.totalorder %v331, 31
      %vm364 = vcmp.ne.s32.totalorder %v332, 31
      %vm365 = vcmp.ne.s32.totalorder %v333, 31
      %v366 = vsel %vm358, 1, 0
      %v367 = vsel %vm359, 1, 0
      %v368 = vsel %vm360, 1, 0
      %v369 = vsel %vm361, 1, 0
      %v370 = vsel %vm362, 1, 0
      %v371 = vsel %vm363, 1, 0
      %v372 = vsel %vm364, 1, 0
      %v373 = vsel %vm365, 1, 0
      %v374 = vcvt.s32.f32 %v366
      %v375 = vcvt.s32.f32 %v367
      %v376 = vcvt.s32.f32 %v368
      %v377 = vcvt.s32.f32 %v369
      %v378 = vcvt.s32.f32 %v370
      %v379 = vcvt.s32.f32 %v371
      %v380 = vcvt.s32.f32 %v372
      %v381 = vcvt.s32.f32 %v373
      %382 = vrot.lane.b32.xlu0 %v220, 1
      %v383 = vpop.permute.xlu0 %382
      %384 = vrot.lane.b32.xlu0 %v221, 1
      %v385 = vpop.permute.xlu0 %384
      %386 = vrot.lane.b32.xlu0 %v222, 1
      %v387 = vpop.permute.xlu0 %386
      %388 = vrot.lane.b32.xlu0 %v223, 1
      %v389 = vpop.permute.xlu0 %388
      %390 = vrot.lane.b32.xlu0 %v224, 1
      %v391 = vpop.permute.xlu0 %390
      %392 = vrot.lane.b32.xlu0 %v225, 1
      %v393 = vpop.permute.xlu0 %392
      %394 = vrot.lane.b32.xlu0 %v226, 1
      %v395 = vpop.permute.xlu0 %394
      %396 = vrot.lane.b32.xlu0 %v227, 1
      %v397 = vpop.permute.xlu0 %396
      %398 = vrot.lane.b32.xlu0 %v228, 1
      %v399 = vpop.permute.xlu0 %398
      %vm400 = vcmp.lt.s32.totalorder %v230, 1
      %v401 = vsel %vm400, %v395, %v397
      %v402 = vsel %vm400, %v393, %v395
      %v403 = vsel %vm400, %v391, %v393
      %v404 = vsel %vm400, %v389, %v391
      %v405 = vsel %vm400, %v387, %v389
      %v406 = vsel %vm400, %v385, %v387
      %v407 = vsel %vm400, %v383, %v385
      %v408 = vsel %vm400, %v399, %v383
      %v409 = vmul.f32 %v408, %v350
      %v410 = vmul.f32 %v407, %v351
      %v411 = vmul.f32 %v406, %v352
      %v412 = vmul.f32 %v405, %v353
      %v413 = vmul.f32 %v404, %v354
      %v414 = vmul.f32 %v403, %v355
      %v415 = vmul.f32 %v402, %v356
      %v416 = vmul.f32 %v401, %v357
      %417 = vrot.lane.b32.xlu0 %v220, 127
      %v418 = vpop.permute.xlu0 %417
      %419 = vrot.lane.b32.xlu0 %v221, 127
      %v420 = vpop.permute.xlu0 %419
      %421 = vrot.lane.b32.xlu0 %v222, 127
      %v422 = vpop.permute.xlu0 %421
      %423 = vrot.lane.b32.xlu0 %v223, 127
      %v424 = vpop.permute.xlu0 %423
      %425 = vrot.lane.b32.xlu0 %v224, 127
      %v426 = vpop.permute.xlu0 %425
      %427 = vrot.lane.b32.xlu0 %v225, 127
      %v428 = vpop.permute.xlu0 %427
      %429 = vrot.lane.b32.xlu0 %v226, 127
      %v430 = vpop.permute.xlu0 %429
      %431 = vrot.lane.b32.xlu0 %v227, 127
      %v432 = vpop.permute.xlu0 %431
      %433 = vrot.lane.b32.xlu0 %v228, 127
      %v434 = vpop.permute.xlu0 %433
      %vm435 = vcmp.lt.s32.totalorder %v230, 127
      %v436 = vsel %vm435, %v432, %v434
      %v437 = vsel %vm435, %v430, %v432
      %v438 = vsel %vm435, %v428, %v430
      %v439 = vsel %vm435, %v426, %v428
      %v440 = vsel %vm435, %v424, %v426
      %v441 = vsel %vm435, %v422, %v424
      %v442 = vsel %vm435, %v420, %v422
      %v443 = vsel %vm435, %v418, %v420
      %v444 = vmul.f32 %v443, %v374
      %v445 = vmul.f32 %v442, %v375
      %v446 = vmul.f32 %v441, %v376
      %v447 = vmul.f32 %v440, %v377
      %v448 = vmul.f32 %v439, %v378
      %v449 = vmul.f32 %v438, %v379
      %v450 = vmul.f32 %v437, %v380
      %v451 = vmul.f32 %v436, %v381
      %452 = vrot.lane.b32.xlu0 %v220, 97
      %v453 = vpop.permute.xlu0 %452
      %454 = vrot.lane.b32.xlu0 %v221, 97
      %v455 = vpop.permute.xlu0 %454
      %456 = vrot.lane.b32.xlu0 %v222, 97
      %v457 = vpop.permute.xlu0 %456
      %458 = vrot.lane.b32.xlu0 %v223, 97
      %v459 = vpop.permute.xlu0 %458
      %460 = vrot.lane.b32.xlu0 %v224, 97
      %v461 = vpop.permute.xlu0 %460
      %462 = vrot.lane.b32.xlu0 %v225, 97
      %v463 = vpop.permute.xlu0 %462
      %464 = vrot.lane.b32.xlu0 %v226, 97
      %v465 = vpop.permute.xlu0 %464
      %466 = vrot.lane.b32.xlu0 %v227, 97
      %v467 = vpop.permute.xlu0 %466
      %468 = vrot.lane.b32.xlu0 %v228, 97
      %v469 = vpop.permute.xlu0 %468
      %vm470 = vcmp.lt.s32.totalorder %v230, 97
      %v471 = vsel %vm470, %v467, %v469
      %v472 = vsel %vm470, %v465, %v467
      %v473 = vsel %vm470, %v463, %v465
      %v474 = vsel %vm470, %v461, %v463
      %v475 = vsel %vm470, %v459, %v461
      %v476 = vsel %vm470, %v457, %v459
      %v477 = vsel %vm470, %v455, %v457
      %v478 = vsel %vm470, %v453, %v455
      %v479 = vmul.f32 %v478, %v350
      %v480 = vmul.f32 %v477, %v351
      %v481 = vmul.f32 %v476, %v352
      %v482 = vmul.f32 %v475, %v353
      %v483 = vmul.f32 %v474, %v354
      %v484 = vmul.f32 %v473, %v355
      %v485 = vmul.f32 %v472, %v356
      %v486 = vmul.f32 %v471, %v357
      %487 = vrot.lane.b32.xlu0 %v220, 96
      %v488 = vpop.permute.xlu0 %487
      %489 = vrot.lane.b32.xlu0 %v221, 96
      %v490 = vpop.permute.xlu0 %489
      %491 = vrot.lane.b32.xlu0 %v222, 96
      %v492 = vpop.permute.xlu0 %491
      %493 = vrot.lane.b32.xlu0 %v223, 96
      %v494 = vpop.permute.xlu0 %493
      %495 = vrot.lane.b32.xlu0 %v224, 96
      %v496 = vpop.permute.xlu0 %495
      %497 = vrot.lane.b32.xlu0 %v225, 96
      %v498 = vpop.permute.xlu0 %497
      %499 = vrot.lane.b32.xlu0 %v226, 96
      %v500 = vpop.permute.xlu0 %499
      %501 = vrot.lane.b32.xlu0 %v227, 96
      %v502 = vpop.permute.xlu0 %501
      %503 = vrot.lane.b32.xlu0 %v228, 96
      %v504 = vpop.permute.xlu0 %503
      %vm505 = vcmp.lt.s32.totalorder %v230, 96
      %v506 = vsel %vm505, %v502, %v504
      %v507 = vsel %vm505, %v500, %v502
      %v508 = vsel %vm505, %v498, %v500
      %v509 = vsel %vm505, %v496, %v498
      %v510 = vsel %vm505, %v494, %v496
      %v511 = vsel %vm505, %v492, %v494
      %v512 = vsel %vm505, %v490, %v492
      %v513 = vsel %vm505, %v488, %v490
      %514 = vrot.lane.b32.xlu0 %v220, 95
      %v515 = vpop.permute.xlu0 %514
      %516 = vrot.lane.b32.xlu0 %v221, 95
      %v517 = vpop.permute.xlu0 %516
      %518 = vrot.lane.b32.xlu0 %v222, 95
      %v519 = vpop.permute.xlu0 %518
      %520 = vrot.lane.b32.xlu0 %v223, 95
      %v521 = vpop.permute.xlu0 %520
      %522 = vrot.lane.b32.xlu0 %v224, 95
      %v523 = vpop.permute.xlu0 %522
      %524 = vrot.lane.b32.xlu0 %v225, 95
      %v525 = vpop.permute.xlu0 %524
      %526 = vrot.lane.b32.xlu0 %v226, 95
      %v527 = vpop.permute.xlu0 %526
      %528 = vrot.lane.b32.xlu0 %v227, 95
      %v529 = vpop.permute.xlu0 %528
      %530 = vrot.lane.b32.xlu0 %v228, 95
      %v531 = vpop.permute.xlu0 %530
      %vm532 = vcmp.lt.s32.totalorder %v230, 95
      %v533 = vsel %vm532, %v529, %v531
      %v534 = vsel %vm532, %v527, %v529
      %v535 = vsel %vm532, %v525, %v527
      %v536 = vsel %vm532, %v523, %v525
      %v537 = vsel %vm532, %v521, %v523
      %v538 = vsel %vm532, %v519, %v521
      %v539 = vsel %vm532, %v517, %v519
      %v540 = vsel %vm532, %v515, %v517
      %v541 = vmul.f32 %v540, %v374
      %v542 = vmul.f32 %v539, %v375
      %v543 = vmul.f32 %v538, %v376
      %v544 = vmul.f32 %v537, %v377
      %v545 = vmul.f32 %v536, %v378
      %v546 = vmul.f32 %v535, %v379
      %v547 = vmul.f32 %v534, %v380
      %v548 = vmul.f32 %v533, %v381
      %549 = vrot.lane.b32.xlu0 %v220, 65
      %v550 = vpop.permute.xlu0 %549
      %551 = vrot.lane.b32.xlu0 %v221, 65
      %v552 = vpop.permute.xlu0 %551
      %553 = vrot.lane.b32.xlu0 %v222, 65
      %v554 = vpop.permute.xlu0 %553
      %555 = vrot.lane.b32.xlu0 %v223, 65
      %v556 = vpop.permute.xlu0 %555
      %557 = vrot.lane.b32.xlu0 %v224, 65
      %v558 = vpop.permute.xlu0 %557
      %559 = vrot.lane.b32.xlu0 %v225, 65
      %v560 = vpop.permute.xlu0 %559
      %561 = vrot.lane.b32.xlu0 %v226, 65
      %v562 = vpop.permute.xlu0 %561
      %563 = vrot.lane.b32.xlu0 %v227, 65
      %v564 = vpop.permute.xlu0 %563
      %565 = vrot.lane.b32.xlu0 %v228, 65
      %v566 = vpop.permute.xlu0 %565
      %vm567 = vcmp.lt.s32.totalorder %v230, 65
      %v568 = vsel %vm567, %v564, %v566
      %v569 = vsel %vm567, %v562, %v564
      %v570 = vsel %vm567, %v560, %v562
      %v571 = vsel %vm567, %v558, %v560
      %v572 = vsel %vm567, %v556, %v558
      %v573 = vsel %vm567, %v554, %v556
      %v574 = vsel %vm567, %v552, %v554
      %v575 = vsel %vm567, %v550, %v552
      %v576 = vmul.f32 %v575, %v350
      %v577 = vmul.f32 %v574, %v351
      %v578 = vmul.f32 %v573, %v352
      %v579 = vmul.f32 %v572, %v353
      %v580 = vmul.f32 %v571, %v354
      %v581 = vmul.f32 %v570, %v355
      %v582 = vmul.f32 %v569, %v356
      %v583 = vmul.f32 %v568, %v357
      %584 = vrot.lane.b32.xlu0 %v220, 64
      %v585 = vpop.permute.xlu0 %584
      %586 = vrot.lane.b32.xlu0 %v221, 64
      %v587 = vpop.permute.xlu0 %586
      %588 = vrot.lane.b32.xlu0 %v222, 64
      %v589 = vpop.permute.xlu0 %588
      %590 = vrot.lane.b32.xlu0 %v223, 64
      %v591 = vpop.permute.xlu0 %590
      %592 = vrot.lane.b32.xlu0 %v224, 64
      %v593 = vpop.permute.xlu0 %592
      %594 = vrot.lane.b32.xlu0 %v225, 64
      %v595 = vpop.permute.xlu0 %594
      %596 = vrot.lane.b32.xlu0 %v226, 64
      %v597 = vpop.permute.xlu0 %596
      %598 = vrot.lane.b32.xlu0 %v227, 64
      %v599 = vpop.permute.xlu0 %598
      %600 = vrot.lane.b32.xlu0 %v228, 64
      %v601 = vpop.permute.xlu0 %600
      %vm602 = vcmp.lt.s32.totalorder %v230, 64
      %v603 = vsel %vm602, %v599, %v601
      %v604 = vsel %vm602, %v597, %v599
      %v605 = vsel %vm602, %v595, %v597
      %v606 = vsel %vm602, %v593, %v595
      %v607 = vsel %vm602, %v591, %v593
      %v608 = vsel %vm602, %v589, %v591
      %v609 = vsel %vm602, %v587, %v589
      %v610 = vsel %vm602, %v585, %v587
      %611 = vrot.lane.b32.xlu0 %v220, 63
      %v612 = vpop.permute.xlu0 %611
      %613 = vrot.lane.b32.xlu0 %v221, 63
      %v614 = vpop.permute.xlu0 %613
      %615 = vrot.lane.b32.xlu0 %v222, 63
      %v616 = vpop.permute.xlu0 %615
      %617 = vrot.lane.b32.xlu0 %v223, 63
      %v618 = vpop.permute.xlu0 %617
      %619 = vrot.lane.b32.xlu0 %v224, 63
      %v620 = vpop.permute.xlu0 %619
      %621 = vrot.lane.b32.xlu0 %v225, 63
      %v622 = vpop.permute.xlu0 %621
      %623 = vrot.lane.b32.xlu0 %v226, 63
      %v624 = vpop.permute.xlu0 %623
      %625 = vrot.lane.b32.xlu0 %v227, 63
      %v626 = vpop.permute.xlu0 %625
      %627 = vrot.lane.b32.xlu0 %v228, 63
      %v628 = vpop.permute.xlu0 %627
      %vm629 = vcmp.lt.s32.totalorder %v230, 63
      %v630 = vsel %vm629, %v626, %v628
      %v631 = vsel %vm629, %v624, %v626
      %v632 = vsel %vm629, %v622, %v624
      %v633 = vsel %vm629, %v620, %v622
      %v634 = vsel %vm629, %v618, %v620
      %v635 = vsel %vm629, %v616, %v618
      %v636 = vsel %vm629, %v614, %v616
      %v637 = vsel %vm629, %v612, %v614
      %v638 = vmul.f32 %v637, %v374
      %v639 = vmul.f32 %v636, %v375
      %v640 = vmul.f32 %v635, %v376
      %v641 = vmul.f32 %v634, %v377
      %v642 = vmul.f32 %v633, %v378
      %v643 = vmul.f32 %v632, %v379
      %v644 = vmul.f32 %v631, %v380
      %v645 = vmul.f32 %v630, %v381
      %v646 = vld [vmem:[%s1] sm:$0xf]
      %vm647 = vcmask 588800
      %v649 = vsel %vm647, %v646, 0
      %651 = vmatprep.subr.mxu0 %v410
      %652 = vmatpush1.msra.mxu0 %v409
      %653 = vmatprep.subr.mxu0 %v221
      %654 = vmatpush1.msra.mxu0 %v220
      %655 = vmatprep.subr.mxu0 %v445
      %656 = vmatpush1.msra.mxu0 %v444
      %657 = vmatprep.subr.mxu0 %v480
      %658 = vmatpush1.msra.mxu0 %v479
      %659 = vmatprep.subr.mxu0 %v512
      %660 = vmatpush1.msra.mxu0 %v513
      %661 = vmatprep.subr.mxu0 %v542
      %662 = vmatpush1.msra.mxu0 %v541
      %663 = vmatprep.subr.mxu0 %v577
      %664 = vmatpush1.msra.mxu0 %v576
      %665 = vmatprep.subr.mxu0 %v609
      %666 = vmatpush1.msra.mxu0 %v610
      %667 = vmatprep.subr.mxu0 %v639
      %668 = vmatpush1.msra.mxu0 %v638
      %669 = vmatprep.subr.mxu0 0.0
      %670 = vmatpush1.msra.mxu0 0.0
      %671 = vmatprep.subr.mxu0 0.0
      %672 = vmatpush1.msra.mxu0 0.0
      %673 = vmatprep.subr.mxu0 0.0
      %674 = vmatpush1.msra.mxu0 0.0
      %675 = vmatprep.subr.mxu0 0.0
      %676 = vmatpush1.msra.mxu0 0.0
      %677 = vmatprep.subr.mxu0 0.0
      %678 = vmatpush1.msra.mxu0 0.0
      %679 = vmatprep.subr.mxu0 0.0
      %680 = vmatpush1.msra.mxu0 0.0
      %681 = vmatprep.subr.mxu0 0.0
      %682 = vmatpush1.msra.mxu0 0.0
      %683 = vmatprep.subr.mxu0 0.0
      %684 = vmatpush1.msra.mxu0 0.0
      %685 = vmatprep.subr.mxu0 0.0
      %686 = vmatpush1.msra.mxu0 0.0
      %687 = vmatprep.subr.mxu0 0.0
      %688 = vmatpush1.msra.mxu0 0.0
      %689 = vmatprep.subr.mxu0 0.0
      %690 = vmatpush1.msra.mxu0 0.0
      %691 = vmatprep.subr.mxu0 0.0
      %692 = vmatpush1.msra.mxu0 0.0
      %693 = vmatprep.subr.mxu0 0.0
      %694 = vmatpush1.msra.mxu0 0.0
      %695 = vmatprep.subr.mxu0 0.0
      %696 = vmatpush1.msra.mxu0 0.0
      %697 = vmatprep.subr.mxu0 0.0
      %698 = vmatpush1.msra.mxu0 0.0
      %699 = vmatprep.subr.mxu0 0.0
      %700 = vmatpush1.msra.mxu0 0.0
      %701 = vmatprep.subr.mxu0 0.0
      %702 = vmatpush1.msra.mxu0 0.0
      %703 = vmatprep.subr.mxu0 0.0
      %704 = vmatpush1.msra.mxu0 0.0
      %705 = vmatprep.subr.mxu0 0.0
      %706 = vmatpush1.msra.mxu0 0.0
      %707 = vmatprep.subr.mxu0 0.0
      %708 = vmatpush1.msra.mxu0 0.0
      %709 = vmatprep.subr.mxu0 0.0
      %710 = vmatpush1.msra.mxu0 0.0
      %711 = vmatprep.subr.mxu0 0.0
      %712 = vmatpush1.msra.mxu0 0.0
      %713 = vmatprep.subr.mxu0 0.0
      %714 = vmatpush1.msra.mxu0 0.0
      %715 = vmatprep.mubr.f32.mxu0 0.0
      %716 = vmatmul.mubr.f32.gmra.mrb[0].mxu0 %v649
      %v717 = vpop.f32.mrb[0].mxu0
      %v718 = vadd.f32 0.0, %v717
      %v719 = vpop.f32.mrb[0].mxu0
      %v720 = vadd.f32 0.0, %v719
      %721 = vdwg.mxu0
      %722 = vmatprep.subr.mxu0 %v412
      %723 = vmatpush1.msra.mxu0 %v411
      %724 = vmatprep.subr.mxu0 %v223
      %725 = vmatpush1.msra.mxu0 %v222
      %726 = vmatprep.subr.mxu0 %v447
      %727 = vmatpush1.msra.mxu0 %v446
      %728 = vmatprep.subr.mxu0 %v482
      %729 = vmatpush1.msra.mxu0 %v481
      %730 = vmatprep.subr.mxu0 %v510
      %731 = vmatpush1.msra.mxu0 %v511
      %732 = vmatprep.subr.mxu0 %v544
      %733 = vmatpush1.msra.mxu0 %v543
      %734 = vmatprep.subr.mxu0 %v579
      %735 = vmatpush1.msra.mxu0 %v578
      %736 = vmatprep.subr.mxu0 %v607
      %737 = vmatpush1.msra.mxu0 %v608
      %738 = vmatprep.subr.mxu0 %v641
      %739 = vmatpush1.msra.mxu0 %v640
      %740 = vmatprep.subr.mxu0 0.0
      %741 = vmatpush1.msra.mxu0 0.0
      %742 = vmatprep.subr.mxu0 0.0
      %743 = vmatpush1.msra.mxu0 0.0
      %744 = vmatprep.subr.mxu0 0.0
      %745 = vmatpush1.msra.mxu0 0.0
      %746 = vmatprep.subr.mxu0 0.0
      %747 = vmatpush1.msra.mxu0 0.0
      %748 = vmatprep.subr.mxu0 0.0
      %749 = vmatpush1.msra.mxu0 0.0
      %750 = vmatprep.subr.mxu0 0.0
      %751 = vmatpush1.msra.mxu0 0.0
      %752 = vmatprep.subr.mxu0 0.0
      %753 = vmatpush1.msra.mxu0 0.0
      %754 = vmatprep.subr.mxu0 0.0
      %755 = vmatpush1.msra.mxu0 0.0
      %756 = vmatprep.subr.mxu0 0.0
      %757 = vmatpush1.msra.mxu0 0.0
      %758 = vmatprep.subr.mxu0 0.0
      %759 = vmatpush1.msra.mxu0 0.0
      %760 = vmatprep.subr.mxu0 0.0
      %761 = vmatpush1.msra.mxu0 0.0
      %762 = vmatprep.subr.mxu0 0.0
      %763 = vmatpush1.msra.mxu0 0.0
      %764 = vmatprep.subr.mxu0 0.0
      %765 = vmatpush1.msra.mxu0 0.0
      %766 = vmatprep.subr.mxu0 0.0
      %767 = vmatpush1.msra.mxu0 0.0
      %768 = vmatprep.subr.mxu0 0.0
      %769 = vmatpush1.msra.mxu0 0.0
      %770 = vmatprep.subr.mxu0 0.0
      %771 = vmatpush1.msra.mxu0 0.0
      %772 = vmatprep.subr.mxu0 0.0
      %773 = vmatpush1.msra.mxu0 0.0
      %774 = vmatprep.subr.mxu0 0.0
      %775 = vmatpush1.msra.mxu0 0.0
      %776 = vmatprep.subr.mxu0 0.0
      %777 = vmatpush1.msra.mxu0 0.0
      %778 = vmatprep.subr.mxu0 0.0
      %779 = vmatpush1.msra.mxu0 0.0
      %780 = vmatprep.subr.mxu0 0.0
      %781 = vmatpush1.msra.mxu0 0.0
      %782 = vmatprep.subr.mxu0 0.0
      %783 = vmatpush1.msra.mxu0 0.0
      %784 = vmatprep.subr.mxu0 0.0
      %785 = vmatpush1.msra.mxu0 0.0
      %786 = vmatprep.mubr.f32.mxu0 0.0
      %787 = vmatmul.mubr.f32.gmra.mrb[0].mxu0 %v649
      %v788 = vpop.f32.mrb[0].mxu0
      %v789 = vadd.f32 0.0, %v788
      %v790 = vpop.f32.mrb[0].mxu0
      %v791 = vadd.f32 0.0, %v790
      %792 = vdwg.mxu0
      %793 = vmatprep.subr.mxu0 %v414
      %794 = vmatpush1.msra.mxu0 %v413
      %795 = vmatprep.subr.mxu0 %v225
      %796 = vmatpush1.msra.mxu0 %v224
      %797 = vmatprep.subr.mxu0 %v449
      %798 = vmatpush1.msra.mxu0 %v448
      %799 = vmatprep.subr.mxu0 %v484
      %800 = vmatpush1.msra.mxu0 %v483
      %801 = vmatprep.subr.mxu0 %v508
      %802 = vmatpush1.msra.mxu0 %v509
      %803 = vmatprep.subr.mxu0 %v546
      %804 = vmatpush1.msra.mxu0 %v545
      %805 = vmatprep.subr.mxu0 %v581
      %806 = vmatpush1.msra.mxu0 %v580
      %807 = vmatprep.subr.mxu0 %v605
      %808 = vmatpush1.msra.mxu0 %v606
      %809 = vmatprep.subr.mxu0 %v643
      %810 = vmatpush1.msra.mxu0 %v642
      %811 = vmatprep.subr.mxu0 0.0
      %812 = vmatpush1.msra.mxu0 0.0
      %813 = vmatprep.subr.mxu0 0.0
      %814 = vmatpush1.msra.mxu0 0.0
      %815 = vmatprep.subr.mxu0 0.0
      %816 = vmatpush1.msra.mxu0 0.0
      %817 = vmatprep.subr.mxu0 0.0
      %818 = vmatpush1.msra.mxu0 0.0
      %819 = vmatprep.subr.mxu0 0.0
      %820 = vmatpush1.msra.mxu0 0.0
      %821 = vmatprep.subr.mxu0 0.0
      %822 = vmatpush1.msra.mxu0 0.0
      %823 = vmatprep.subr.mxu0 0.0
      %824 = vmatpush1.msra.mxu0 0.0
      %825 = vmatprep.subr.mxu0 0.0
      %826 = vmatpush1.msra.mxu0 0.0
      %827 = vmatprep.subr.mxu0 0.0
      %828 = vmatpush1.msra.mxu0 0.0
      %829 = vmatprep.subr.mxu0 0.0
      %830 = vmatpush1.msra.mxu0 0.0
      %831 = vmatprep.subr.mxu0 0.0
      %832 = vmatpush1.msra.mxu0 0.0
      %833 = vmatprep.subr.mxu0 0.0
      %834 = vmatpush1.msra.mxu0 0.0
      %835 = vmatprep.subr.mxu0 0.0
      %836 = vmatpush1.msra.mxu0 0.0
      %837 = vmatprep.subr.mxu0 0.0
      %838 = vmatpush1.msra.mxu0 0.0
      %839 = vmatprep.subr.mxu0 0.0
      %840 = vmatpush1.msra.mxu0 0.0
      %841 = vmatprep.subr.mxu0 0.0
      %842 = vmatpush1.msra.mxu0 0.0
      %843 = vmatprep.subr.mxu0 0.0
      %844 = vmatpush1.msra.mxu0 0.0
      %845 = vmatprep.subr.mxu0 0.0
      %846 = vmatpush1.msra.mxu0 0.0
      %847 = vmatprep.subr.mxu0 0.0
      %848 = vmatpush1.msra.mxu0 0.0
      %849 = vmatprep.subr.mxu0 0.0
      %850 = vmatpush1.msra.mxu0 0.0
      %851 = vmatprep.subr.mxu0 0.0
      %852 = vmatpush1.msra.mxu0 0.0
      %853 = vmatprep.subr.mxu0 0.0
      %854 = vmatpush1.msra.mxu0 0.0
      %855 = vmatprep.subr.mxu0 0.0
      %856 = vmatpush1.msra.mxu0 0.0
      %857 = vmatprep.mubr.f32.mxu0 0.0
      %858 = vmatmul.mubr.f32.gmra.mrb[0].mxu0 %v649
      %v859 = vpop.f32.mrb[0].mxu0
      %v860 = vadd.f32 0.0, %v859
      %v861 = vpop.f32.mrb[0].mxu0
      %v862 = vadd.f32 0.0, %v861
      %863 = vdwg.mxu0
      %864 = vmatprep.subr.mxu0 %v416
      %865 = vmatpush1.msra.mxu0 %v415
      %866 = vmatprep.subr.mxu0 %v227
      %867 = vmatpush1.msra.mxu0 %v226
      %868 = vmatprep.subr.mxu0 %v451
      %869 = vmatpush1.msra.mxu0 %v450
      %870 = vmatprep.subr.mxu0 %v486
      %871 = vmatpush1.msra.mxu0 %v485
      %872 = vmatprep.subr.mxu0 %v506
      %873 = vmatpush1.msra.mxu0 %v507
      %874 = vmatprep.subr.mxu0 %v548
      %875 = vmatpush1.msra.mxu0 %v547
      %876 = vmatprep.subr.mxu0 %v583
      %877 = vmatpush1.msra.mxu0 %v582
      %878 = vmatprep.subr.mxu0 %v603
      %879 = vmatpush1.msra.mxu0 %v604
      %880 = vmatprep.subr.mxu0 %v645
      %881 = vmatpush1.msra.mxu0 %v644
      %882 = vmatprep.subr.mxu0 0.0
      %883 = vmatpush1.msra.mxu0 0.0
      %884 = vmatprep.subr.mxu0 0.0
      %885 = vmatpush1.msra.mxu0 0.0
      %886 = vmatprep.subr.mxu0 0.0
      %887 = vmatpush1.msra.mxu0 0.0
      %888 = vmatprep.subr.mxu0 0.0
      %889 = vmatpush1.msra.mxu0 0.0
      %890 = vmatprep.subr.mxu0 0.0
      %891 = vmatpush1.msra.mxu0 0.0
      %892 = vmatprep.subr.mxu0 0.0
      %893 = vmatpush1.msra.mxu0 0.0
      %894 = vmatprep.subr.mxu0 0.0
      %895 = vmatpush1.msra.mxu0 0.0
      %896 = vmatprep.subr.mxu0 0.0
      %897 = vmatpush1.msra.mxu0 0.0
      %898 = vmatprep.subr.mxu0 0.0
      %899 = vmatpush1.msra.mxu0 0.0
      %900 = vmatprep.subr.mxu0 0.0
      %901 = vmatpush1.msra.mxu0 0.0
      %902 = vmatprep.subr.mxu0 0.0
      %903 = vmatpush1.msra.mxu0 0.0
      %904 = vmatprep.subr.mxu0 0.0
      %905 = vmatpush1.msra.mxu0 0.0
      %906 = vmatprep.subr.mxu0 0.0
      %907 = vmatpush1.msra.mxu0 0.0
      %908 = vmatprep.subr.mxu0 0.0
      %909 = vmatpush1.msra.mxu0 0.0
      %910 = vmatprep.subr.mxu0 0.0
      %911 = vmatpush1.msra.mxu0 0.0
      %912 = vmatprep.subr.mxu0 0.0
      %913 = vmatpush1.msra.mxu0 0.0
      %914 = vmatprep.subr.mxu0 0.0
      %915 = vmatpush1.msra.mxu0 0.0
      %916 = vmatprep.subr.mxu0 0.0
      %917 = vmatpush1.msra.mxu0 0.0
      %918 = vmatprep.subr.mxu0 0.0
      %919 = vmatpush1.msra.mxu0 0.0
      %920 = vmatprep.subr.mxu0 0.0
      %921 = vmatpush1.msra.mxu0 0.0
      %922 = vmatprep.subr.mxu0 0.0
      %923 = vmatpush1.msra.mxu0 0.0
      %924 = vmatprep.subr.mxu0 0.0
      %925 = vmatpush1.msra.mxu0 0.0
      %926 = vmatprep.subr.mxu0 0.0
      %927 = vmatpush1.msra.mxu0 0.0
      %928 = vmatprep.mubr.f32.mxu0 0.0
      %929 = vmatmul.mubr.f32.gmra.mrb[0].mxu0 %v649
      %v930 = vpop.f32.mrb[0].mxu0
      %v931 = vadd.f32 0.0, %v930
      %v932 = vpop.f32.mrb[0].mxu0
      %v933 = vadd.f32 0.0, %v932
      %934 = vdwg.mxu0
      %vm935 = vcmask 1043456
      %v936 = vsel %vm935, %v718, 0.0
      %v937 = vsel %vm935, %v720, 0.0
      %v938 = vadd.f32 %v936, %v937
      %v939 = vsel %vm935, %v789, 0.0
      %v940 = vadd.f32 %v938, %v939
      %v941 = vsel %vm935, %v791, 0.0
      %v942 = vadd.f32 %v940, %v941
      %v943 = vsel %vm935, %v860, 0.0
      %v944 = vadd.f32 %v942, %v943
      %v945 = vsel %vm935, %v862, 0.0
      %v946 = vadd.f32 %v944, %v945
      %v947 = vsel %vm935, %v931, 0.0
      %v948 = vadd.f32 %v946, %v947
      %v949 = vsel %vm935, %v933, 0.0
      %v950 = vadd.f32 %v948, %v949
      %951 = vadd.xlane.f32.xlu0 %v950
      %v952 = vpop.xlane.xlu0 %951
      %v953 = vsel %vm935, %v952, 0.0
      %v954 = vrot.slane %v953, 4
      %v955 = vadd.f32 %v953, %v954
      %v956 = vrot.slane %v955, 2
      %v957 = vadd.f32 %v955, %v956
      %v958 = vrot.slane %v957, 1
      %v959 = vadd.f32 %v957, %v958
      %v960 = vmul.f32 %v718, %v718
      %v961 = vmul.f32 %v720, %v720
      %v962 = vmul.f32 %v789, %v789
      %v963 = vmul.f32 %v791, %v791
      %v964 = vmul.f32 %v860, %v860
      %v965 = vmul.f32 %v862, %v862
      %v966 = vmul.f32 %v931, %v931
      %v967 = vmul.f32 %v933, %v933
      %v968 = vsel %vm935, %v960, 0.0
      %v969 = vsel %vm935, %v961, 0.0
      %v970 = vadd.f32 %v968, %v969
      %v971 = vsel %vm935, %v962, 0.0
      %v972 = vadd.f32 %v970, %v971
      %v973 = vsel %vm935, %v963, 0.0
      %v974 = vadd.f32 %v972, %v973
      %v975 = vsel %vm935, %v964, 0.0
      %v976 = vadd.f32 %v974, %v975
      %v977 = vsel %vm935, %v965, 0.0
      %v978 = vadd.f32 %v976, %v977
      %v979 = vsel %vm935, %v966, 0.0
      %v980 = vadd.f32 %v978, %v979
      %v981 = vsel %vm935, %v967, 0.0
      %v982 = vadd.f32 %v980, %v981
      %983 = vadd.xlane.f32.xlu0 %v982
      %v984 = vpop.xlane.xlu0 %983
      %v985 = vsel %vm935, %v984, 0.0
      %v986 = vrot.slane %v985, 4
      %v987 = vadd.f32 %v985, %v986
      %v988 = vrot.slane %v987, 2
      %v989 = vadd.f32 %v987, %v988
      %v990 = vrot.slane %v989, 1
      %v991 = vadd.f32 %v989, %v990
      %v992 = vmul.f32 %v959, 0.00024414063
      %v993 = vmul.f32 %v991, 0.00024414063
      %v994 = vmul.f32 %v992, %v992
      %v995 = vsub.f32 %v993, %v994
      %v996 = vmax.f32 %v995, 0.0
      %v997 = vadd.f32 %v996, 1e-05
      %v998 = vrsqrt.pop %v997
      %v999 = vld [vmem:[%s2] sm:$0xf]
      %v1000 = vmul.f32 %v999, %v998
      %v1001 = vld [vmem:[%s209] sm:$0xf]
      %v1002 = vmul.f32 %v992, %v1000
      %v1003 = vsub.f32 %v1001, %v1002
      %1005 = vset.pattern.permute.xlu0 0
      %1006 = vperm.xlu0 %1005, %v1000
      %v1007 = vpop.permute.xlu0 %1006
      %v1009 = vmul.f32 %v718, %v1007
      %v1010 = vmul.f32 %v720, %v1007
      %v1011 = vmul.f32 %v789, %v1007
      %v1012 = vmul.f32 %v791, %v1007
      %v1013 = vmul.f32 %v860, %v1007
      %v1014 = vmul.f32 %v862, %v1007
      %v1015 = vmul.f32 %v931, %v1007
      %v1016 = vmul.f32 %v933, %v1007
      %1018 = vset.pattern.permute.xlu0 0
      %1019 = vperm.xlu0 %1018, %v1003
      %v1020 = vpop.permute.xlu0 %1019
      %v1022 = vadd.f32 %v1009, %v1020
      %v1023 = vadd.f32 %v1010, %v1020
      %v1024 = vadd.f32 %v1011, %v1020
      %v1025 = vadd.f32 %v1012, %v1020
      %v1026 = vadd.f32 %v1013, %v1020
      %v1027 = vadd.f32 %v1014, %v1020
      %v1028 = vadd.f32 %v1015, %v1020
      %v1029 = vadd.f32 %v1016, %v1020
      %v1038 = vcombine.low %v1022, %v1023
      %v1039 = vcombine.low %v1024, %v1025
      %v1040 = vcombine.low %v1026, %v1027
      %v1041 = vcombine.low %v1028, %v1029
      %1046 = vst [vmem:[%s214] sm:$0xff] %v1038
      %1047 = vst [vmem:[%s214 + $0x8] sm:$0xff] %v1039
      %1048 = vst [vmem:[%s214 + $0x10] sm:$0xff] %v1040
      %1049 = vst [vmem:[%s214 + $0x18] sm:$0xff] %v1041
      %p1050 = scmp.lt.s32.totalorder %s15, 1
      %s1051 = scalar_select %p1050, %s15, 1
      %s1052 = smul.addr %s1051, 8
      %s1053 = smul.addr %s1052, 4
      %s1054 = scalar_lea.vmem %s4, %s1053
      // Predicated region
      $region37: #{up_forward.3} parent=35 // pred_check
        %p1055 = pneg %p127
      $region38: #{up_forward.3} parent=35 // pred_check_branch
        %1057 = sbr.rel (%p1055) target = $region40
      $region39: #{up_forward.3} parent=35 // pred_region
        _
      $region40: #{up_forward.3} parent=35 // pred_fallthru
        _
    $region36: #{up_forward.3} parent=5 // pred_fallthru
      _
    %p1058 = scmp.le.s32.totalorder 2, %s10
    // Predicated region
    $region41: #{up_forward.3} parent=5 // pred_check
      %p1059 = pneg %p1058
    $region42: #{up_forward.3} parent=5 // pred_check_branch
      %1061 = sbr.rel (%p1059) target = $region44
    $region43: #{up_forward.3} parent=5 // pred_region
      %s1062 = ssub.s32 %s10, 2
      // Predicated region
      $region45: #{up_forward.3} parent=43 // pred_check
        %p1063 = pneg %p133
      $region46: #{up_forward.3} parent=43 // pred_check_branch
        %1065 = sbr.rel (%p1063) target = $region48
      $region47: #{up_forward.3} parent=43 // pred_region
        %p1066 = scmp.lt.s32.totalorder %s16, 1
        %s1067 = scalar_select %p1066, %s16, 1
        %s1068 = smul.addr %s1067, 8
        %s1069 = smul.addr %s1068, 4
        %s1070 = scalar_lea.vmem %s4, %s1069
      $region48: #{up_forward.3} parent=43 // pred_fallthru
        _
    $region44: #{up_forward.3} parent=5 // pred_fallthru
      _
  $region6: #{up_forward.3} parent=0 // loop_footer
    %s14 = sadd.s32 1, %s10
  $region7: #{up_forward.3} parent=0 // loop_footer_branch
    %9 = sbr.rel target = $region3
  $region8: #{up_forward.3} parent=0 // loop_exit
    _

// kernel: up_forward.2
$region0: #{up_forward.2}
  #allocation0 [shape = 'u32[]', space=smem, size = 0x4, offset = 0x4, fixed_abs, tag = 'smem constant byte address 0x4 - core index']
  #allocation1 [shape = 'u32[144,128]{1,0:T(1,128)}', space=vmem, size = 0x12000, scoped, tag = 'internal scratch']
  %s0 = inlined_call_operand.vmem [shape: bf16[2,8,1152], index: 0, kind: input, shape index: {}]
  %s1 = inlined_call_operand.vmem [shape: f32[8,72], index: 1, kind: input, shape index: {}]
  %s2 = inlined_call_operand.vmem [shape: f32[8,1], index: 2, kind: input, shape index: {}]
  %s3 = inlined_call_operand.vmem [shape: f32[2,8,1], index: 3, kind: input, shape index: {}]
  %s4 = inlined_call_operand.vmem [shape: bf16[2,8,1024], index: 4, kind: output, shape index: {}]
  %s5 = sld [smem:[#allocation0]]
  $region49: #{up_forward.2} parent=0
    _
  %s7 = ssub.s32 1, %s5
  %s8 = scalar_select 0, %s7, %s5
  loop: start=0, step=1, limit=4
  $region2: #{up_forward.2} parent=0 // loop_pre_header
    _
  $region3: #{up_forward.2} parent=0 // loop_header
    %s10 = sphi 0, %s14
    %p11 = scmp.ge.s32.totalorder %s10, 4
    %s20 = sphi 0, %s22
    %s23 = sphi 0, %s20
    %s24 = sphi 0, %s23
    %s40 = sphi 0, %s24
    %s44 = sphi 0, %s44
    %s46 = sphi 0, %s44
    %s47 = sphi 0, %s46
    %s61 = sphi 0, %s47
    %s65 = sphi 0, %s65
    %s67 = sphi 0, %s65
    %s68 = sphi 0, %s67
    %s82 = sphi 0, %s68
    %s88 = sphi 0, %s90
    %s91 = sphi 0, %s88
    %s92 = sphi 0, %s91
    %s108 = sphi 0, %s92
    %s114 = sphi 0, %s116
    %s117 = sphi 0, %s114
    %s118 = sphi 0, %s117
    %s134 = sphi 0, %s118
  $region4: #{up_forward.2} parent=0 // loop_header_branch
    %13 = sbr.rel (%p11) target = $region8
  $region5: #{up_forward.2} parent=0 // loop_body
    %s15 = ssub.s32 %s10, 1
    %s16 = ssub.s32 %s10, 2
    %s17 = sadd.s32 %s10, 1
    %s18 = ssub.s32 %s10, %s17
    %p19 = scmp.eq.s32.totalorder %s18, 0
    %s21 = sadd.s32 %s20, 1
    %s22 = scalar_select %p19, %s20, %s21
    %p25 = pneg %p19
    %p26 = scmp.eq.s32.totalorder %s10, 1
    %p27 = por %p25, %p26
    %p28 = scmp.ne.s32.totalorder %s20, %s23
    %p29 = scmp.eq.s32.totalorder %s10, 0
    %p30 = por %p28, %p29
    %p31 = scmp.ne.s32.totalorder %s20, %s23
    %p32 = scmp.eq.s32.totalorder %s15, 1
    %p33 = por %p31, %p32
    %p34 = scmp.ne.s32.totalorder %s23, %s24
    %p35 = scmp.eq.s32.totalorder %s15, 0
    %p36 = por %p34, %p35
    %p37 = scmp.ne.s32.totalorder %s23, %s24
    %p38 = scmp.eq.s32.totalorder %s16, 1
    %p39 = por %p37, %p38
    %p41 = scmp.ne.s32.totalorder %s24, %s40
    %p42 = scmp.eq.s32.totalorder %s16, 0
    %p43 = por %p41, %p42
    %s45 = sadd.s32 %s44, 1
    %p48 = scmp.eq.s32.totalorder %s10, 1
    %p49 = scmp.ne.s32.totalorder %s44, %s46
    %p50 = scmp.eq.s32.totalorder %s10, 0
    %p51 = por %p49, %p50
    %p52 = scmp.ne.s32.totalorder %s44, %s46
    %p53 = scmp.eq.s32.totalorder %s15, 1
    %p54 = por %p52, %p53
    %p55 = scmp.ne.s32.totalorder %s46, %s47
    %p56 = scmp.eq.s32.totalorder %s15, 0
    %p57 = por %p55, %p56
    %p58 = scmp.ne.s32.totalorder %s46, %s47
    %p59 = scmp.eq.s32.totalorder %s16, 1
    %p60 = por %p58, %p59
    %p62 = scmp.ne.s32.totalorder %s47, %s61
    %p63 = scmp.eq.s32.totalorder %s16, 0
    %p64 = por %p62, %p63
    %s66 = sadd.s32 %s65, 1
    %p69 = scmp.eq.s32.totalorder %s10, 1
    %p70 = scmp.ne.s32.totalorder %s65, %s67
    %p71 = scmp.eq.s32.totalorder %s10, 0
    %p72 = por %p70, %p71
    %p73 = scmp.ne.s32.totalorder %s65, %s67
    %p74 = scmp.eq.s32.totalorder %s15, 1
    %p75 = por %p73, %p74
    %p76 = scmp.ne.s32.totalorder %s67, %s68
    %p77 = scmp.eq.s32.totalorder %s15, 0
    %p78 = por %p76, %p77
    %p79 = scmp.ne.s32.totalorder %s67, %s68
    %p80 = scmp.eq.s32.totalorder %s16, 1
    %p81 = por %p79, %p80
    %p83 = scmp.ne.s32.totalorder %s68, %s82
    %p84 = scmp.eq.s32.totalorder %s16, 0
    %p85 = por %p83, %p84
    %s86 = ssub.s32 %s10, %s17
    %p87 = scmp.eq.s32.totalorder %s86, 0
    %s89 = sadd.s32 %s88, 1
    %s90 = scalar_select %p87, %s88, %s89
    %p93 = pneg %p87
    %p94 = scmp.eq.s32.totalorder %s10, 1
    %p95 = por %p93, %p94
    %p96 = scmp.ne.s32.totalorder %s88, %s91
    %p97 = scmp.eq.s32.totalorder %s10, 0
    %p98 = por %p96, %p97
    %p99 = scmp.ne.s32.totalorder %s88, %s91
    %p100 = scmp.eq.s32.totalorder %s15, 1
    %p101 = por %p99, %p100
    %p102 = scmp.ne.s32.totalorder %s91, %s92
    %p103 = scmp.eq.s32.totalorder %s15, 0
    %p104 = por %p102, %p103
    %p105 = scmp.ne.s32.totalorder %s91, %s92
    %p106 = scmp.eq.s32.totalorder %s16, 1
    %p107 = por %p105, %p106
    %p109 = scmp.ne.s32.totalorder %s92, %s108
    %p110 = scmp.eq.s32.totalorder %s16, 0
    %p111 = por %p109, %p110
    %s112 = ssub.s32 %s10, %s17
    %p113 = scmp.eq.s32.totalorder %s112, 0
    %s115 = sadd.s32 %s114, 1
    %s116 = scalar_select %p113, %s114, %s115
    %p119 = pneg %p113
    %p120 = scmp.eq.s32.totalorder %s10, 1
    %p121 = por %p119, %p120
    %p122 = scmp.ne.s32.totalorder %s114, %s117
    %p123 = scmp.eq.s32.totalorder %s10, 0
    %p124 = por %p122, %p123
    %p125 = scmp.ne.s32.totalorder %s114, %s117
    %p126 = scmp.eq.s32.totalorder %s15, 1
    %p127 = por %p125, %p126
    %p128 = scmp.ne.s32.totalorder %s117, %s118
    %p129 = scmp.eq.s32.totalorder %s15, 0
    %p130 = por %p128, %p129
    %p131 = scmp.ne.s32.totalorder %s117, %s118
    %p132 = scmp.eq.s32.totalorder %s16, 1
    %p133 = por %p131, %p132
    %p135 = scmp.ne.s32.totalorder %s118, %s134
    %p136 = scmp.eq.s32.totalorder %s16, 0
    %p137 = por %p135, %p136
    %p138 = scmp.le.s32.totalorder 1, %s10
    %p139 = scmp.lt.s32.totalorder %s10, 3
    %p140 = pnand %p138, %p139
    %p141 = pneg %p140
    // Predicated region
    $region9: #{up_forward.2} parent=5 // pred_check
      _
    $region10: #{up_forward.2} parent=5 // pred_check_branch
      %143 = sbr.rel (%p140) target = $region12
    $region11: #{up_forward.2} parent=5 // pred_region
      %s144 = ssub.s32 %s10, 1
      // Predicated region
      $region13: #{up_forward.2} parent=11 // pred_check
        %p145 = pneg %p57
      $region14: #{up_forward.2} parent=11 // pred_check_branch
        %147 = sbr.rel (%p145) target = $region16
      $region15: #{up_forward.2} parent=11 // pred_region
        _
      $region16: #{up_forward.2} parent=11 // pred_fallthru
        _
      // Predicated region
      $region17: #{up_forward.2} parent=11 // pred_check
        %p148 = pneg %p78
      $region18: #{up_forward.2} parent=11 // pred_check_branch
        %150 = sbr.rel (%p148) target = $region20
      $region19: #{up_forward.2} parent=11 // pred_region
        _
      $region20: #{up_forward.2} parent=11 // pred_fallthru
        _
    $region12: #{up_forward.2} parent=5 // pred_fallthru
      _
    %p151 = scmp.lt.s32.totalorder %s10, 2
    // Predicated region
    $region21: #{up_forward.2} parent=5 // pred_check
      %p152 = pneg %p151
    $region22: #{up_forward.2} parent=5 // pred_check_branch
      %154 = sbr.rel (%p152) target = $region24
    $region23: #{up_forward.2} parent=5 // pred_region
      // Predicated region
      $region25: #{up_forward.2} parent=23 // pred_check
        %p155 = pneg %p30
      $region26: #{up_forward.2} parent=23 // pred_check_branch
        %157 = sbr.rel (%p155) target = $region28
      $region27: #{up_forward.2} parent=23 // pred_region
        %p158 = scmp.lt.s32.totalorder %s10, 1
        %s159 = scalar_select %p158, %s10, 1
        %s160 = smul.addr %s159, 9
        %s161 = smul.addr %s160, 4
        %s162 = scalar_lea.vmem %s0, %s161
      $region28: #{up_forward.2} parent=23 // pred_fallthru
        _
      // Predicated region
      $region29: #{up_forward.2} parent=23 // pred_check
        %p163 = pneg %p98
      $region30: #{up_forward.2} parent=23 // pred_check_branch
        %165 = sbr.rel (%p163) target = $region32
      $region31: #{up_forward.2} parent=23 // pred_region
        %p166 = scmp.lt.s32.totalorder %s10, 1
        %s167 = scalar_select %p166, %s10, 1
        %s168 = smul.addr %s167, 8
        %s169 = scalar_lea.vmem %s3, %s168
      $region32: #{up_forward.2} parent=23 // pred_fallthru
        _
    $region24: #{up_forward.2} parent=5 // pred_fallthru
      _
    %p170 = scmp.le.s32.totalorder 1, %s10
    %p171 = scmp.lt.s32.totalorder %s10, 3
    %p172 = pnand %p170, %p171
    %p173 = pneg %p172
    // Predicated region
    $region33: #{up_forward.2} parent=5 // pred_check
      _
    $region34: #{up_forward.2} parent=5 // pred_check_branch
      %175 = sbr.rel (%p172) target = $region36
    $region35: #{up_forward.2} parent=5 // pred_region
      %s176 = ssub.s32 %s10, 1
      %p177 = scmp.lt.s32.totalorder %s15, 1
      %s178 = scalar_select %p177, %s15, 1
      %s179 = smul.addr %s178, 9
      %s180 = smul.addr %s179, 4
      %s181 = scalar_lea.vmem %s0, %s180
      %p182 = pneg %p36
      %p183 = pneg %p33
      %p184 = pneg %p57
      %p185 = pneg %p54
      %p186 = pneg %p78
      %p187 = pneg %p75
      %p188 = scmp.lt.s32.totalorder %s15, 1
      %s189 = scalar_select %p188, %s15, 1
      %s190 = smul.addr %s189, 8
      %s191 = scalar_lea.vmem %s3, %s190
      %p192 = pneg %p104
      %p193 = pneg %p101
      %p194 = pneg %p130
      %p195 = pneg %p127
      %p196 = scmp.lt.s32.totalorder %s15, 1
      %s197 = scalar_select %p196, %s15, 1
      %s198 = smul.addr %s197, 8
      %s199 = smul.addr %s198, 4
      %s200 = scalar_lea.vmem %s4, %s199
      %p201 = scmp.lt.s32.totalorder %s15, 1
      %s202 = scalar_select %p201, %s15, 1
      %s203 = smul.addr %s202, 9
      %s204 = smul.addr %s203, 4
      %s205 = scalar_lea.vmem %s0, %s204
      %p206 = scmp.lt.s32.totalorder %s15, 1
      %s207 = scalar_select %p206, %s15, 1
      %s208 = smul.addr %s207, 8
      %s209 = scalar_lea.vmem %s3, %s208
      %p210 = scmp.lt.s32.totalorder %s15, 1
      %s211 = scalar_select %p210, %s15, 1
      %s212 = smul.addr %s211, 8
      %s213 = smul.addr %s212, 4
      %s214 = scalar_lea.vmem %s4, %s213
      %v215 = vld [vmem:[%s205] sm:$0xff]
      %v216 = vld [vmem:[%s205 + $0x8] sm:$0xff]
      %v217 = vld [vmem:[%s205 + $0x10] sm:$0xff]
      %v218 = vld [vmem:[%s205 + $0x18] sm:$0xff]
      %v219 = vld [vmem:[%s205 + $0x20] sm:$0xf]
      %v220 = vunpack.c.l.bf16 %v215
      %v221 = vunpack.c.h.bf16 %v215
      %v222 = vunpack.c.l.bf16 %v216
      %v223 = vunpack.c.h.bf16 %v216
      %v224 = vunpack.c.l.bf16 %v217
      %v225 = vunpack.c.h.bf16 %v217
      %v226 = vunpack.c.l.bf16 %v218
      %v227 = vunpack.c.h.bf16 %v218
      %v228 = vunpack.c.l.bf16 %v219
      %v229 = vlaneseq
      %v230 = vand.u32 %v229, 127
      %v231 = vadd.s32 %v230, 128
      %v232 = vadd.s32 %v230, 256
      %v233 = vadd.s32 %v230, 384
      %v234 = vadd.s32 %v230, 512
      %v235 = vadd.s32 %v230, 640
      %v236 = vadd.s32 %v230, 768
      %v237 = vadd.s32 %v230, 896
      %vm238 = vcmp.lt.s32.totalorder %v230, 0
      %v239 = vsub.s32 0, %v230
      %v240 = vsel %vm238, %v239, %v230
      %v241 = vshrl.u32 %v240, 5
      %v242 = vand.u32 %v240, 31
      %v243 = vsub.s32 0, %v242
      %v244 = vsel %vm238, %v243, %v242
      %vm245 = vcmp.lt.s32.totalorder %v231, 0
      %v246 = vsub.s32 0, %v231
      %v247 = vsel %vm245, %v246, %v231
      %v248 = vshrl.u32 %v247, 5
      %v249 = vand.u32 %v247, 31
      %v250 = vsub.s32 0, %v249
      %v251 = vsel %vm245, %v250, %v249
      %vm252 = vcmp.lt.s32.totalorder %v232, 0
      %v253 = vsub.s32 0, %v232
      %v254 = vsel %vm252, %v253, %v232
      %v255 = vshrl.u32 %v254, 5
      %v256 = vand.u32 %v254, 31
      %v257 = vsub.s32 0, %v256
      %v258 = vsel %vm252, %v257, %v256
      %vm259 = vcmp.lt.s32.totalorder %v233, 0
      %v260 = vsub.s32 0, %v233
      %v261 = vsel %vm259, %v260, %v233
      %v262 = vshrl.u32 %v261, 5
      %v263 = vand.u32 %v261, 31
      %v264 = vsub.s32 0, %v263
      %v265 = vsel %vm259, %v264, %v263
      %vm266 = vcmp.lt.s32.totalorder %v234, 0
      %v267 = vsub.s32 0, %v234
      %v268 = vsel %vm266, %v267, %v234
      %v269 = vshrl.u32 %v268, 5
      %v270 = vand.u32 %v268, 31
      %v271 = vsub.s32 0, %v270
      %v272 = vsel %vm266, %v271, %v270
      %vm273 = vcmp.lt.s32.totalorder %v235, 0
      %v274 = vsub.s32 0, %v235
      %v275 = vsel %vm273, %v274, %v235
      %v276 = vshrl.u32 %v275, 5
      %v277 = vand.u32 %v275, 31
      %v278 = vsub.s32 0, %v277
      %v279 = vsel %vm273, %v278, %v277
      %vm280 = vcmp.lt.s32.totalorder %v236, 0
      %v281 = vsub.s32 0, %v236
      %v282 = vsel %vm280, %v281, %v236
      %v283 = vshrl.u32 %v282, 5
      %v284 = vand.u32 %v282, 31
      %v285 = vsub.s32 0, %v284
      %v286 = vsel %vm280, %v285, %v284
      %vm287 = vcmp.lt.s32.totalorder %v237, 0
      %v288 = vsub.s32 0, %v237
      %v289 = vsel %vm287, %v288, %v237
      %v290 = vshrl.u32 %v289, 5
      %v291 = vand.u32 %v289, 31
      %v292 = vsub.s32 0, %v291
      %v293 = vsel %vm287, %v292, %v291
      %vm294 = vcmp.ne.s32.totalorder %v244, 0
      %vm295 = vcmp.ne.s32.totalorder %v251, 0
      %vm296 = vcmp.ne.s32.totalorder %v258, 0
      %vm297 = vcmp.ne.s32.totalorder %v265, 0
      %vm298 = vcmp.ne.s32.totalorder %v272, 0
      %vm299 = vcmp.ne.s32.totalorder %v279, 0
      %vm300 = vcmp.ne.s32.totalorder %v286, 0
      %vm301 = vcmp.ne.s32.totalorder %v293, 0
      %vm302 = vcmp.lt.s32.totalorder %v244, 0
      %vm303 = vcmp.lt.s32.totalorder %v251, 0
      %vm304 = vcmp.lt.s32.totalorder %v258, 0
      %vm305 = vcmp.lt.s32.totalorder %v265, 0
      %vm306 = vcmp.lt.s32.totalorder %v272, 0
      %vm307 = vcmp.lt.s32.totalorder %v279, 0
      %vm308 = vcmp.lt.s32.totalorder %v286, 0
      %vm309 = vcmp.lt.s32.totalorder %v293, 0
      %vm310 = vmand %vm302, %vm294
      %vm311 = vmand %vm303, %vm295
      %vm312 = vmand %vm304, %vm296
      %vm313 = vmand %vm305, %vm297
      %vm314 = vmand %vm306, %vm298
      %vm315 = vmand %vm307, %vm299
      %vm316 = vmand %vm308, %vm300
      %vm317 = vmand %vm309, %vm301
      %v318 = vadd.s32 %v244, 32
      %v319 = vadd.s32 %v251, 32
      %v320 = vadd.s32 %v258, 32
      %v321 = vadd.s32 %v265, 32
      %v322 = vadd.s32 %v272, 32
      %v323 = vadd.s32 %v279, 32
      %v324 = vadd.s32 %v286, 32
      %v325 = vadd.s32 %v293, 32
      %v326 = vsel %vm310, %v318, %v244
      %v327 = vsel %vm311, %v319, %v251
      %v328 = vsel %vm312, %v320, %v258
      %v329 = vsel %vm313, %v321, %v265
      %v330 = vsel %vm314, %v322, %v272
      %v331 = vsel %vm315, %v323, %v279
      %v332 = vsel %vm316, %v324, %v286
      %v333 = vsel %vm317, %v325, %v293
      %vm334 = vcmp.ne.s32.totalorder %v326, 0
      %vm335 = vcmp.ne.s32.totalorder %v327, 0
      %vm336 = vcmp.ne.s32.totalorder %v328, 0
      %vm337 = vcmp.ne.s32.totalorder %v329, 0
      %vm338 = vcmp.ne.s32.totalorder %v330, 0
      %vm339 = vcmp.ne.s32.totalorder %v331, 0
      %vm340 = vcmp.ne.s32.totalorder %v332, 0
      %vm341 = vcmp.ne.s32.totalorder %v333, 0
      %v342 = vsel %vm334, 1, 0
      %v343 = vsel %vm335, 1, 0
      %v344 = vsel %vm336, 1, 0
      %v345 = vsel %vm337, 1, 0
      %v346 = vsel %vm338, 1, 0
      %v347 = vsel %vm339, 1, 0
      %v348 = vsel %vm340, 1, 0
      %v349 = vsel %vm341, 1, 0
      %v350 = vcvt.s32.f32 %v342
      %v351 = vcvt.s32.f32 %v343
      %v352 = vcvt.s32.f32 %v344
      %v353 = vcvt.s32.f32 %v345
      %v354 = vcvt.s32.f32 %v346
      %v355 = vcvt.s32.f32 %v347
      %v356 = vcvt.s32.f32 %v348
      %v357 = vcvt.s32.f32 %v349
      %vm358 = vcmp.ne.s32.totalorder %v326, 31
      %vm359 = vcmp.ne.s32.totalorder %v327, 31
      %vm360 = vcmp.ne.s32.totalorder %v328, 31
      %vm361 = vcmp.ne.s32.totalorder %v329, 31
      %vm362 = vcmp.ne.s32.totalorder %v330, 31
      %vm363 = vcmp.ne.s32.totalorder %v331, 31
      %vm364 = vcmp.ne.s32.totalorder %v332, 31
      %vm365 = vcmp.ne.s32.totalorder %v333, 31
      %v366 = vsel %vm358, 1, 0
      %v367 = vsel %vm359, 1, 0
      %v368 = vsel %vm360, 1, 0
      %v369 = vsel %vm361, 1, 0
      %v370 = vsel %vm362, 1, 0
      %v371 = vsel %vm363, 1, 0
      %v372 = vsel %vm364, 1, 0
      %v373 = vsel %vm365, 1, 0
      %v374 = vcvt.s32.f32 %v366
      %v375 = vcvt.s32.f32 %v367
      %v376 = vcvt.s32.f32 %v368
      %v377 = vcvt.s32.f32 %v369
      %v378 = vcvt.s32.f32 %v370
      %v379 = vcvt.s32.f32 %v371
      %v380 = vcvt.s32.f32 %v372
      %v381 = vcvt.s32.f32 %v373
      %382 = vrot.lane.b32.xlu0 %v220, 1
      %v383 = vpop.permute.xlu0 %382
      %384 = vrot.lane.b32.xlu0 %v221, 1
      %v385 = vpop.permute.xlu0 %384
      %386 = vrot.lane.b32.xlu0 %v222, 1
      %v387 = vpop.permute.xlu0 %386
      %388 = vrot.lane.b32.xlu0 %v223, 1
      %v389 = vpop.permute.xlu0 %388
      %390 = vrot.lane.b32.xlu0 %v224, 1
      %v391 = vpop.permute.xlu0 %390
      %392 = vrot.lane.b32.xlu0 %v225, 1
      %v393 = vpop.permute.xlu0 %392
      %394 = vrot.lane.b32.xlu0 %v226, 1
      %v395 = vpop.permute.xlu0 %394
      %396 = vrot.lane.b32.xlu0 %v227, 1
      %v397 = vpop.permute.xlu0 %396
      %398 = vrot.lane.b32.xlu0 %v228, 1
      %v399 = vpop.permute.xlu0 %398
      %vm400 = vcmp.lt.s32.totalorder %v230, 1
      %v401 = vsel %vm400, %v395, %v397
      %v402 = vsel %vm400, %v393, %v395
      %v403 = vsel %vm400, %v391, %v393
      %v404 = vsel %vm400, %v389, %v391
      %v405 = vsel %vm400, %v387, %v389
      %v406 = vsel %vm400, %v385, %v387
      %v407 = vsel %vm400, %v383, %v385
      %v408 = vsel %vm400, %v399, %v383
      %v409 = vmul.f32 %v408, %v350
      %v410 = vmul.f32 %v407, %v351
      %v411 = vmul.f32 %v406, %v352
      %v412 = vmul.f32 %v405, %v353
      %v413 = vmul.f32 %v404, %v354
      %v414 = vmul.f32 %v403, %v355
      %v415 = vmul.f32 %v402, %v356
      %v416 = vmul.f32 %v401, %v357
      %417 = vrot.lane.b32.xlu0 %v220, 127
      %v418 = vpop.permute.xlu0 %417
      %419 = vrot.lane.b32.xlu0 %v221, 127
      %v420 = vpop.permute.xlu0 %419
      %421 = vrot.lane.b32.xlu0 %v222, 127
      %v422 = vpop.permute.xlu0 %421
      %423 = vrot.lane.b32.xlu0 %v223, 127
      %v424 = vpop.permute.xlu0 %423
      %425 = vrot.lane.b32.xlu0 %v224, 127
      %v426 = vpop.permute.xlu0 %425
      %427 = vrot.lane.b32.xlu0 %v225, 127
      %v428 = vpop.permute.xlu0 %427
      %429 = vrot.lane.b32.xlu0 %v226, 127
      %v430 = vpop.permute.xlu0 %429
      %431 = vrot.lane.b32.xlu0 %v227, 127
      %v432 = vpop.permute.xlu0 %431
      %433 = vrot.lane.b32.xlu0 %v228, 127
      %v434 = vpop.permute.xlu0 %433
      %vm435 = vcmp.lt.s32.totalorder %v230, 127
      %v436 = vsel %vm435, %v432, %v434
      %v437 = vsel %vm435, %v430, %v432
      %v438 = vsel %vm435, %v428, %v430
      %v439 = vsel %vm435, %v426, %v428
      %v440 = vsel %vm435, %v424, %v426
      %v441 = vsel %vm435, %v422, %v424
      %v442 = vsel %vm435, %v420, %v422
      %v443 = vsel %vm435, %v418, %v420
      %v444 = vmul.f32 %v443, %v374
      %v445 = vmul.f32 %v442, %v375
      %v446 = vmul.f32 %v441, %v376
      %v447 = vmul.f32 %v440, %v377
      %v448 = vmul.f32 %v439, %v378
      %v449 = vmul.f32 %v438, %v379
      %v450 = vmul.f32 %v437, %v380
      %v451 = vmul.f32 %v436, %v381
      %452 = vrot.lane.b32.xlu0 %v220, 97
      %v453 = vpop.permute.xlu0 %452
      %454 = vrot.lane.b32.xlu0 %v221, 97
      %v455 = vpop.permute.xlu0 %454
      %456 = vrot.lane.b32.xlu0 %v222, 97
      %v457 = vpop.permute.xlu0 %456
      %458 = vrot.lane.b32.xlu0 %v223, 97
      %v459 = vpop.permute.xlu0 %458
      %460 = vrot.lane.b32.xlu0 %v224, 97
      %v461 = vpop.permute.xlu0 %460
      %462 = vrot.lane.b32.xlu0 %v225, 97
      %v463 = vpop.permute.xlu0 %462
      %464 = vrot.lane.b32.xlu0 %v226, 97
      %v465 = vpop.permute.xlu0 %464
      %466 = vrot.lane.b32.xlu0 %v227, 97
      %v467 = vpop.permute.xlu0 %466
      %468 = vrot.lane.b32.xlu0 %v228, 97
      %v469 = vpop.permute.xlu0 %468
      %vm470 = vcmp.lt.s32.totalorder %v230, 97
      %v471 = vsel %vm470, %v467, %v469
      %v472 = vsel %vm470, %v465, %v467
      %v473 = vsel %vm470, %v463, %v465
      %v474 = vsel %vm470, %v461, %v463
      %v475 = vsel %vm470, %v459, %v461
      %v476 = vsel %vm470, %v457, %v459
      %v477 = vsel %vm470, %v455, %v457
      %v478 = vsel %vm470, %v453, %v455
      %v479 = vmul.f32 %v478, %v350
      %v480 = vmul.f32 %v477, %v351
      %v481 = vmul.f32 %v476, %v352
      %v482 = vmul.f32 %v475, %v353
      %v483 = vmul.f32 %v474, %v354
      %v484 = vmul.f32 %v473, %v355
      %v485 = vmul.f32 %v472, %v356
      %v486 = vmul.f32 %v471, %v357
      %487 = vrot.lane.b32.xlu0 %v220, 96
      %v488 = vpop.permute.xlu0 %487
      %489 = vrot.lane.b32.xlu0 %v221, 96
      %v490 = vpop.permute.xlu0 %489
      %491 = vrot.lane.b32.xlu0 %v222, 96
      %v492 = vpop.permute.xlu0 %491
      %493 = vrot.lane.b32.xlu0 %v223, 96
      %v494 = vpop.permute.xlu0 %493
      %495 = vrot.lane.b32.xlu0 %v224, 96
      %v496 = vpop.permute.xlu0 %495
      %497 = vrot.lane.b32.xlu0 %v225, 96
      %v498 = vpop.permute.xlu0 %497
      %499 = vrot.lane.b32.xlu0 %v226, 96
      %v500 = vpop.permute.xlu0 %499
      %501 = vrot.lane.b32.xlu0 %v227, 96
      %v502 = vpop.permute.xlu0 %501
      %503 = vrot.lane.b32.xlu0 %v228, 96
      %v504 = vpop.permute.xlu0 %503
      %vm505 = vcmp.lt.s32.totalorder %v230, 96
      %v506 = vsel %vm505, %v502, %v504
      %v507 = vsel %vm505, %v500, %v502
      %v508 = vsel %vm505, %v498, %v500
      %v509 = vsel %vm505, %v496, %v498
      %v510 = vsel %vm505, %v494, %v496
      %v511 = vsel %vm505, %v492, %v494
      %v512 = vsel %vm505, %v490, %v492
      %v513 = vsel %vm505, %v488, %v490
      %514 = vrot.lane.b32.xlu0 %v220, 95
      %v515 = vpop.permute.xlu0 %514
      %516 = vrot.lane.b32.xlu0 %v221, 95
      %v517 = vpop.permute.xlu0 %516
      %518 = vrot.lane.b32.xlu0 %v222, 95
      %v519 = vpop.permute.xlu0 %518
      %520 = vrot.lane.b32.xlu0 %v223, 95
      %v521 = vpop.permute.xlu0 %520
      %522 = vrot.lane.b32.xlu0 %v224, 95
      %v523 = vpop.permute.xlu0 %522
      %524 = vrot.lane.b32.xlu0 %v225, 95
      %v525 = vpop.permute.xlu0 %524
      %526 = vrot.lane.b32.xlu0 %v226, 95
      %v527 = vpop.permute.xlu0 %526
      %528 = vrot.lane.b32.xlu0 %v227, 95
      %v529 = vpop.permute.xlu0 %528
      %530 = vrot.lane.b32.xlu0 %v228, 95
      %v531 = vpop.permute.xlu0 %530
      %vm532 = vcmp.lt.s32.totalorder %v230, 95
      %v533 = vsel %vm532, %v529, %v531
      %v534 = vsel %vm532, %v527, %v529
      %v535 = vsel %vm532, %v525, %v527
      %v536 = vsel %vm532, %v523, %v525
      %v537 = vsel %vm532, %v521, %v523
      %v538 = vsel %vm532, %v519, %v521
      %v539 = vsel %vm532, %v517, %v519
      %v540 = vsel %vm532, %v515, %v517
      %v541 = vmul.f32 %v540, %v374
      %v542 = vmul.f32 %v539, %v375
      %v543 = vmul.f32 %v538, %v376
      %v544 = vmul.f32 %v537, %v377
      %v545 = vmul.f32 %v536, %v378
      %v546 = vmul.f32 %v535, %v379
      %v547 = vmul.f32 %v534, %v380
      %v548 = vmul.f32 %v533, %v381
      %549 = vrot.lane.b32.xlu0 %v220, 65
      %v550 = vpop.permute.xlu0 %549
      %551 = vrot.lane.b32.xlu0 %v221, 65
      %v552 = vpop.permute.xlu0 %551
      %553 = vrot.lane.b32.xlu0 %v222, 65
      %v554 = vpop.permute.xlu0 %553
      %555 = vrot.lane.b32.xlu0 %v223, 65
      %v556 = vpop.permute.xlu0 %555
      %557 = vrot.lane.b32.xlu0 %v224, 65
      %v558 = vpop.permute.xlu0 %557
      %559 = vrot.lane.b32.xlu0 %v225, 65
      %v560 = vpop.permute.xlu0 %559
      %561 = vrot.lane.b32.xlu0 %v226, 65
      %v562 = vpop.permute.xlu0 %561
      %563 = vrot.lane.b32.xlu0 %v227, 65
      %v564 = vpop.permute.xlu0 %563
      %565 = vrot.lane.b32.xlu0 %v228, 65
      %v566 = vpop.permute.xlu0 %565
      %vm567 = vcmp.lt.s32.totalorder %v230, 65
      %v568 = vsel %vm567, %v564, %v566
      %v569 = vsel %vm567, %v562, %v564
      %v570 = vsel %vm567, %v560, %v562
      %v571 = vsel %vm567, %v558, %v560
      %v572 = vsel %vm567, %v556, %v558
      %v573 = vsel %vm567, %v554, %v556
      %v574 = vsel %vm567, %v552, %v554
      %v575 = vsel %vm567, %v550, %v552
      %v576 = vmul.f32 %v575, %v350
      %v577 = vmul.f32 %v574, %v351
      %v578 = vmul.f32 %v573, %v352
      %v579 = vmul.f32 %v572, %v353
      %v580 = vmul.f32 %v571, %v354
      %v581 = vmul.f32 %v570, %v355
      %v582 = vmul.f32 %v569, %v356
      %v583 = vmul.f32 %v568, %v357
      %584 = vrot.lane.b32.xlu0 %v220, 64
      %v585 = vpop.permute.xlu0 %584
      %586 = vrot.lane.b32.xlu0 %v221, 64
      %v587 = vpop.permute.xlu0 %586
      %588 = vrot.lane.b32.xlu0 %v222, 64
      %v589 = vpop.permute.xlu0 %588
      %590 = vrot.lane.b32.xlu0 %v223, 64
      %v591 = vpop.permute.xlu0 %590
      %592 = vrot.lane.b32.xlu0 %v224, 64
      %v593 = vpop.permute.xlu0 %592
      %594 = vrot.lane.b32.xlu0 %v225, 64
      %v595 = vpop.permute.xlu0 %594
      %596 = vrot.lane.b32.xlu0 %v226, 64
      %v597 = vpop.permute.xlu0 %596
      %598 = vrot.lane.b32.xlu0 %v227, 64
      %v599 = vpop.permute.xlu0 %598
      %600 = vrot.lane.b32.xlu0 %v228, 64
      %v601 = vpop.permute.xlu0 %600
      %vm602 = vcmp.lt.s32.totalorder %v230, 64
      %v603 = vsel %vm602, %v599, %v601
      %v604 = vsel %vm602, %v597, %v599
      %v605 = vsel %vm602, %v595, %v597
      %v606 = vsel %vm602, %v593, %v595
      %v607 = vsel %vm602, %v591, %v593
      %v608 = vsel %vm602, %v589, %v591
      %v609 = vsel %vm602, %v587, %v589
      %v610 = vsel %vm602, %v585, %v587
      %611 = vrot.lane.b32.xlu0 %v220, 63
      %v612 = vpop.permute.xlu0 %611
      %613 = vrot.lane.b32.xlu0 %v221, 63
      %v614 = vpop.permute.xlu0 %613
      %615 = vrot.lane.b32.xlu0 %v222, 63
      %v616 = vpop.permute.xlu0 %615
      %617 = vrot.lane.b32.xlu0 %v223, 63
      %v618 = vpop.permute.xlu0 %617
      %619 = vrot.lane.b32.xlu0 %v224, 63
      %v620 = vpop.permute.xlu0 %619
      %621 = vrot.lane.b32.xlu0 %v225, 63
      %v622 = vpop.permute.xlu0 %621
      %623 = vrot.lane.b32.xlu0 %v226, 63
      %v624 = vpop.permute.xlu0 %623
      %625 = vrot.lane.b32.xlu0 %v227, 63
      %v626 = vpop.permute.xlu0 %625
      %627 = vrot.lane.b32.xlu0 %v228, 63
      %v628 = vpop.permute.xlu0 %627
      %vm629 = vcmp.lt.s32.totalorder %v230, 63
      %v630 = vsel %vm629, %v626, %v628
      %v631 = vsel %vm629, %v624, %v626
      %v632 = vsel %vm629, %v622, %v624
      %v633 = vsel %vm629, %v620, %v622
      %v634 = vsel %vm629, %v618, %v620
      %v635 = vsel %vm629, %v616, %v618
      %v636 = vsel %vm629, %v614, %v616
      %v637 = vsel %vm629, %v612, %v614
      %v638 = vmul.f32 %v637, %v374
      %v639 = vmul.f32 %v636, %v375
      %v640 = vmul.f32 %v635, %v376
      %v641 = vmul.f32 %v634, %v377
      %v642 = vmul.f32 %v633, %v378
      %v643 = vmul.f32 %v632, %v379
      %v644 = vmul.f32 %v631, %v380
      %v645 = vmul.f32 %v630, %v381
      %v646 = vld [vmem:[%s1] sm:$0xff]
      %vm647 = vcmask 588800
      %v649 = vsel %vm647, %v646, 0
      %651 = vmatprep.subr.mxu0 %v410
      %652 = vmatpush1.msra.mxu0 %v409
      %653 = vmatprep.subr.mxu0 %v221
      %654 = vmatpush1.msra.mxu0 %v220
      %655 = vmatprep.subr.mxu0 %v445
      %656 = vmatpush1.msra.mxu0 %v444
      %657 = vmatprep.subr.mxu0 %v480
      %658 = vmatpush1.msra.mxu0 %v479
      %659 = vmatprep.subr.mxu0 %v512
      %660 = vmatpush1.msra.mxu0 %v513
      %661 = vmatprep.subr.mxu0 %v542
      %662 = vmatpush1.msra.mxu0 %v541
      %663 = vmatprep.subr.mxu0 %v577
      %664 = vmatpush1.msra.mxu0 %v576
      %665 = vmatprep.subr.mxu0 %v609
      %666 = vmatpush1.msra.mxu0 %v610
      %667 = vmatprep.subr.mxu0 %v639
      %668 = vmatpush1.msra.mxu0 %v638
      %669 = vmatprep.subr.mxu0 0.0
      %670 = vmatpush1.msra.mxu0 0.0
      %671 = vmatprep.subr.mxu0 0.0
      %672 = vmatpush1.msra.mxu0 0.0
      %673 = vmatprep.subr.mxu0 0.0
      %674 = vmatpush1.msra.mxu0 0.0
      %675 = vmatprep.subr.mxu0 0.0
      %676 = vmatpush1.msra.mxu0 0.0
      %677 = vmatprep.subr.mxu0 0.0
      %678 = vmatpush1.msra.mxu0 0.0
      %679 = vmatprep.subr.mxu0 0.0
      %680 = vmatpush1.msra.mxu0 0.0
      %681 = vmatprep.subr.mxu0 0.0
      %682 = vmatpush1.msra.mxu0 0.0
      %683 = vmatprep.subr.mxu0 0.0
      %684 = vmatpush1.msra.mxu0 0.0
      %685 = vmatprep.subr.mxu0 0.0
      %686 = vmatpush1.msra.mxu0 0.0
      %687 = vmatprep.subr.mxu0 0.0
      %688 = vmatpush1.msra.mxu0 0.0
      %689 = vmatprep.subr.mxu0 0.0
      %690 = vmatpush1.msra.mxu0 0.0
      %691 = vmatprep.subr.mxu0 0.0
      %692 = vmatpush1.msra.mxu0 0.0
      %693 = vmatprep.subr.mxu0 0.0
      %694 = vmatpush1.msra.mxu0 0.0
      %695 = vmatprep.subr.mxu0 0.0
      %696 = vmatpush1.msra.mxu0 0.0
      %697 = vmatprep.subr.mxu0 0.0
      %698 = vmatpush1.msra.mxu0 0.0
      %699 = vmatprep.subr.mxu0 0.0
      %700 = vmatpush1.msra.mxu0 0.0
      %701 = vmatprep.subr.mxu0 0.0
      %702 = vmatpush1.msra.mxu0 0.0
      %703 = vmatprep.subr.mxu0 0.0
      %704 = vmatpush1.msra.mxu0 0.0
      %705 = vmatprep.subr.mxu0 0.0
      %706 = vmatpush1.msra.mxu0 0.0
      %707 = vmatprep.subr.mxu0 0.0
      %708 = vmatpush1.msra.mxu0 0.0
      %709 = vmatprep.subr.mxu0 0.0
      %710 = vmatpush1.msra.mxu0 0.0
      %711 = vmatprep.subr.mxu0 0.0
      %712 = vmatpush1.msra.mxu0 0.0
      %713 = vmatprep.subr.mxu0 0.0
      %714 = vmatpush1.msra.mxu0 0.0
      %715 = vmatprep.mubr.f32.mxu0 0.0
      %716 = vmatmul.mubr.f32.gmra.mrb[0].mxu0 %v649
      %v717 = vpop.f32.mrb[0].mxu0
      %v718 = vadd.f32 0.0, %v717
      %v719 = vpop.f32.mrb[0].mxu0
      %v720 = vadd.f32 0.0, %v719
      %721 = vdwg.mxu0
      %722 = vmatprep.subr.mxu0 %v412
      %723 = vmatpush1.msra.mxu0 %v411
      %724 = vmatprep.subr.mxu0 %v223
      %725 = vmatpush1.msra.mxu0 %v222
      %726 = vmatprep.subr.mxu0 %v447
      %727 = vmatpush1.msra.mxu0 %v446
      %728 = vmatprep.subr.mxu0 %v482
      %729 = vmatpush1.msra.mxu0 %v481
      %730 = vmatprep.subr.mxu0 %v510
      %731 = vmatpush1.msra.mxu0 %v511
      %732 = vmatprep.subr.mxu0 %v544
      %733 = vmatpush1.msra.mxu0 %v543
      %734 = vmatprep.subr.mxu0 %v579
      %735 = vmatpush1.msra.mxu0 %v578
      %736 = vmatprep.subr.mxu0 %v607
      %737 = vmatpush1.msra.mxu0 %v608
      %738 = vmatprep.subr.mxu0 %v641
      %739 = vmatpush1.msra.mxu0 %v640
      %740 = vmatprep.subr.mxu0 0.0
      %741 = vmatpush1.msra.mxu0 0.0
      %742 = vmatprep.subr.mxu0 0.0
      %743 = vmatpush1.msra.mxu0 0.0
      %744 = vmatprep.subr.mxu0 0.0
      %745 = vmatpush1.msra.mxu0 0.0
      %746 = vmatprep.subr.mxu0 0.0
      %747 = vmatpush1.msra.mxu0 0.0
      %748 = vmatprep.subr.mxu0 0.0
      %749 = vmatpush1.msra.mxu0 0.0
      %750 = vmatprep.subr.mxu0 0.0
      %751 = vmatpush1.msra.mxu0 0.0
      %752 = vmatprep.subr.mxu0 0.0
      %753 = vmatpush1.msra.mxu0 0.0
      %754 = vmatprep.subr.mxu0 0.0
      %755 = vmatpush1.msra.mxu0 0.0
      %756 = vmatprep.subr.mxu0 0.0
      %757 = vmatpush1.msra.mxu0 0.0
      %758 = vmatprep.subr.mxu0 0.0
      %759 = vmatpush1.msra.mxu0 0.0
      %760 = vmatprep.subr.mxu0 0.0
      %761 = vmatpush1.msra.mxu0 0.0
      %762 = vmatprep.subr.mxu0 0.0
      %763 = vmatpush1.msra.mxu0 0.0
      %764 = vmatprep.subr.mxu0 0.0
      %765 = vmatpush1.msra.mxu0 0.0
      %766 = vmatprep.subr.mxu0 0.0
      %767 = vmatpush1.msra.mxu0 0.0
      %768 = vmatprep.subr.mxu0 0.0
      %769 = vmatpush1.msra.mxu0 0.0
      %770 = vmatprep.subr.mxu0 0.0
      %771 = vmatpush1.msra.mxu0 0.0
      %772 = vmatprep.subr.mxu0 0.0
      %773 = vmatpush1.msra.mxu0 0.0
      %774 = vmatprep.subr.mxu0 0.0
      %775 = vmatpush1.msra.mxu0 0.0
      %776 = vmatprep.subr.mxu0 0.0
      %777 = vmatpush1.msra.mxu0 0.0
      %778 = vmatprep.subr.mxu0 0.0
      %779 = vmatpush1.msra.mxu0 0.0
      %780 = vmatprep.subr.mxu0 0.0
      %781 = vmatpush1.msra.mxu0 0.0
      %782 = vmatprep.subr.mxu0 0.0
      %783 = vmatpush1.msra.mxu0 0.0
      %784 = vmatprep.subr.mxu0 0.0
      %785 = vmatpush1.msra.mxu0 0.0
      %786 = vmatprep.mubr.f32.mxu0 0.0
      %787 = vmatmul.mubr.f32.gmra.mrb[0].mxu0 %v649
      %v788 = vpop.f32.mrb[0].mxu0
      %v789 = vadd.f32 0.0, %v788
      %v790 = vpop.f32.mrb[0].mxu0
      %v791 = vadd.f32 0.0, %v790
      %792 = vdwg.mxu0
      %793 = vmatprep.subr.mxu0 %v414
      %794 = vmatpush1.msra.mxu0 %v413
      %795 = vmatprep.subr.mxu0 %v225
      %796 = vmatpush1.msra.mxu0 %v224
      %797 = vmatprep.subr.mxu0 %v449
      %798 = vmatpush1.msra.mxu0 %v448
      %799 = vmatprep.subr.mxu0 %v484
      %800 = vmatpush1.msra.mxu0 %v483
      %801 = vmatprep.subr.mxu0 %v508
      %802 = vmatpush1.msra.mxu0 %v509
      %803 = vmatprep.subr.mxu0 %v546
      %804 = vmatpush1.msra.mxu0 %v545
      %805 = vmatprep.subr.mxu0 %v581
      %806 = vmatpush1.msra.mxu0 %v580
      %807 = vmatprep.subr.mxu0 %v605
      %808 = vmatpush1.msra.mxu0 %v606
      %809 = vmatprep.subr.mxu0 %v643
      %810 = vmatpush1.msra.mxu0 %v642
      %811 = vmatprep.subr.mxu0 0.0
      %812 = vmatpush1.msra.mxu0 0.0
      %813 = vmatprep.subr.mxu0 0.0
      %814 = vmatpush1.msra.mxu0 0.0
      %815 = vmatprep.subr.mxu0 0.0
      %816 = vmatpush1.msra.mxu0 0.0
      %817 = vmatprep.subr.mxu0 0.0
      %818 = vmatpush1.msra.mxu0 0.0
      %819 = vmatprep.subr.mxu0 0.0
      %820 = vmatpush1.msra.mxu0 0.0
      %821 = vmatprep.subr.mxu0 0.0
      %822 = vmatpush1.msra.mxu0 0.0
      %823 = vmatprep.subr.mxu0 0.0
      %824 = vmatpush1.msra.mxu0 0.0
      %825 = vmatprep.subr.mxu0 0.0
      %826 = vmatpush1.msra.mxu0 0.0
      %827 = vmatprep.subr.mxu0 0.0
      %828 = vmatpush1.msra.mxu0 0.0
      %829 = vmatprep.subr.mxu0 0.0
      %830 = vmatpush1.msra.mxu0 0.0
      %831 = vmatprep.subr.mxu0 0.0
      %832 = vmatpush1.msra.mxu0 0.0
      %833 = vmatprep.subr.mxu0 0.0
      %834 = vmatpush1.msra.mxu0 0.0
      %835 = vmatprep.subr.mxu0 0.0
      %836 = vmatpush1.msra.mxu0 0.0
      %837 = vmatprep.subr.mxu0 0.0
      %838 = vmatpush1.msra.mxu0 0.0
      %839 = vmatprep.subr.mxu0 0.0
      %840 = vmatpush1.msra.mxu0 0.0
      %841 = vmatprep.subr.mxu0 0.0
      %842 = vmatpush1.msra.mxu0 0.0
      %843 = vmatprep.subr.mxu0 0.0
      %844 = vmatpush1.msra.mxu0 0.0
      %845 = vmatprep.subr.mxu0 0.0
      %846 = vmatpush1.msra.mxu0 0.0
      %847 = vmatprep.subr.mxu0 0.0
      %848 = vmatpush1.msra.mxu0 0.0
      %849 = vmatprep.subr.mxu0 0.0
      %850 = vmatpush1.msra.mxu0 0.0
      %851 = vmatprep.subr.mxu0 0.0
      %852 = vmatpush1.msra.mxu0 0.0
      %853 = vmatprep.subr.mxu0 0.0
      %854 = vmatpush1.msra.mxu0 0.0
      %855 = vmatprep.subr.mxu0 0.0
      %856 = vmatpush1.msra.mxu0 0.0
      %857 = vmatprep.mubr.f32.mxu0 0.0
      %858 = vmatmul.mubr.f32.gmra.mrb[0].mxu0 %v649
      %v859 = vpop.f32.mrb[0].mxu0
      %v860 = vadd.f32 0.0, %v859
      %v861 = vpop.f32.mrb[0].mxu0
      %v862 = vadd.f32 0.0, %v861
      %863 = vdwg.mxu0
      %864 = vmatprep.subr.mxu0 %v416
      %865 = vmatpush1.msra.mxu0 %v415
      %866 = vmatprep.subr.mxu0 %v227
      %867 = vmatpush1.msra.mxu0 %v226
      %868 = vmatprep.subr.mxu0 %v451
      %869 = vmatpush1.msra.mxu0 %v450
      %870 = vmatprep.subr.mxu0 %v486
      %871 = vmatpush1.msra.mxu0 %v485
      %872 = vmatprep.subr.mxu0 %v506
      %873 = vmatpush1.msra.mxu0 %v507
      %874 = vmatprep.subr.mxu0 %v548
      %875 = vmatpush1.msra.mxu0 %v547
      %876 = vmatprep.subr.mxu0 %v583
      %877 = vmatpush1.msra.mxu0 %v582
      %878 = vmatprep.subr.mxu0 %v603
      %879 = vmatpush1.msra.mxu0 %v604
      %880 = vmatprep.subr.mxu0 %v645
      %881 = vmatpush1.msra.mxu0 %v644
      %882 = vmatprep.subr.mxu0 0.0
      %883 = vmatpush1.msra.mxu0 0.0
      %884 = vmatprep.subr.mxu0 0.0
      %885 = vmatpush1.msra.mxu0 0.0
      %886 = vmatprep.subr.mxu0 0.0
      %887 = vmatpush1.msra.mxu0 0.0
      %888 = vmatprep.subr.mxu0 0.0
      %889 = vmatpush1.msra.mxu0 0.0
      %890 = vmatprep.subr.mxu0 0.0
      %891 = vmatpush1.msra.mxu0 0.0
      %892 = vmatprep.subr.mxu0 0.0
      %893 = vmatpush1.msra.mxu0 0.0
      %894 = vmatprep.subr.mxu0 0.0
      %895 = vmatpush1.msra.mxu0 0.0
      %896 = vmatprep.subr.mxu0 0.0
      %897 = vmatpush1.msra.mxu0 0.0
      %898 = vmatprep.subr.mxu0 0.0
      %899 = vmatpush1.msra.mxu0 0.0
      %900 = vmatprep.subr.mxu0 0.0
      %901 = vmatpush1.msra.mxu0 0.0
      %902 = vmatprep.subr.mxu0 0.0
      %903 = vmatpush1.msra.mxu0 0.0
      %904 = vmatprep.subr.mxu0 0.0
      %905 = vmatpush1.msra.mxu0 0.0
      %906 = vmatprep.subr.mxu0 0.0
      %907 = vmatpush1.msra.mxu0 0.0
      %908 = vmatprep.subr.mxu0 0.0
      %909 = vmatpush1.msra.mxu0 0.0
      %910 = vmatprep.subr.mxu0 0.0
      %911 = vmatpush1.msra.mxu0 0.0
      %912 = vmatprep.subr.mxu0 0.0
      %913 = vmatpush1.msra.mxu0 0.0
      %914 = vmatprep.subr.mxu0 0.0
      %915 = vmatpush1.msra.mxu0 0.0
      %916 = vmatprep.subr.mxu0 0.0
      %917 = vmatpush1.msra.mxu0 0.0
      %918 = vmatprep.subr.mxu0 0.0
      %919 = vmatpush1.msra.mxu0 0.0
      %920 = vmatprep.subr.mxu0 0.0
      %921 = vmatpush1.msra.mxu0 0.0
      %922 = vmatprep.subr.mxu0 0.0
      %923 = vmatpush1.msra.mxu0 0.0
      %924 = vmatprep.subr.mxu0 0.0
      %925 = vmatpush1.msra.mxu0 0.0
      %926 = vmatprep.subr.mxu0 0.0
      %927 = vmatpush1.msra.mxu0 0.0
      %928 = vmatprep.mubr.f32.mxu0 0.0
      %929 = vmatmul.mubr.f32.gmra.mrb[0].mxu0 %v649
      %v930 = vpop.f32.mrb[0].mxu0
      %v931 = vadd.f32 0.0, %v930
      %v932 = vpop.f32.mrb[0].mxu0
      %v933 = vadd.f32 0.0, %v932
      %934 = vdwg.mxu0
      %v935 = vadd.f32 %v718, %v720
      %v936 = vadd.f32 %v935, %v789
      %v937 = vadd.f32 %v936, %v791
      %v938 = vadd.f32 %v937, %v860
      %v939 = vadd.f32 %v938, %v862
      %v940 = vadd.f32 %v939, %v931
      %v941 = vadd.f32 %v940, %v933
      %942 = vadd.xlane.f32.xlu0 %v941
      %v943 = vpop.xlane.xlu0 %942
      %v944 = vrot.slane %v943, 4
      %v945 = vadd.f32 %v943, %v944
      %v946 = vrot.slane %v945, 2
      %v947 = vadd.f32 %v945, %v946
      %v948 = vrot.slane %v947, 1
      %v949 = vadd.f32 %v947, %v948
      %v950 = vmul.f32 %v718, %v718
      %v951 = vmul.f32 %v720, %v720
      %v952 = vmul.f32 %v789, %v789
      %v953 = vmul.f32 %v791, %v791
      %v954 = vmul.f32 %v860, %v860
      %v955 = vmul.f32 %v862, %v862
      %v956 = vmul.f32 %v931, %v931
      %v957 = vmul.f32 %v933, %v933
      %v958 = vadd.f32 %v950, %v951
      %v959 = vadd.f32 %v958, %v952
      %v960 = vadd.f32 %v959, %v953
      %v961 = vadd.f32 %v960, %v954
      %v962 = vadd.f32 %v961, %v955
      %v963 = vadd.f32 %v962, %v956
      %v964 = vadd.f32 %v963, %v957
      %965 = vadd.xlane.f32.xlu0 %v964
      %v966 = vpop.xlane.xlu0 %965
      %v967 = vrot.slane %v966, 4
      %v968 = vadd.f32 %v966, %v967
      %v969 = vrot.slane %v968, 2
      %v970 = vadd.f32 %v968, %v969
      %v971 = vrot.slane %v970, 1
      %v972 = vadd.f32 %v970, %v971
      %v973 = vmul.f32 %v949, 0.00012207031
      %v974 = vmul.f32 %v972, 0.00012207031
      %v975 = vmul.f32 %v973, %v973
      %v976 = vsub.f32 %v974, %v975
      %v977 = vmax.f32 %v976, 0.0
      %v978 = vadd.f32 %v977, 1e-05
      %v979 = vrsqrt.pop %v978
      %v980 = vld [vmem:[%s2] sm:$0xff]
      %v981 = vmul.f32 %v980, %v979
      %v982 = vld [vmem:[%s209] sm:$0xff]
      %v983 = vmul.f32 %v973, %v981
      %v984 = vsub.f32 %v982, %v983
      %986 = vset.pattern.permute.xlu0 0
      %987 = vperm.xlu0 %986, %v981
      %v988 = vpop.permute.xlu0 %987
      %v990 = vmul.f32 %v718, %v988
      %v991 = vmul.f32 %v720, %v988
      %v992 = vmul.f32 %v789, %v988
      %v993 = vmul.f32 %v791, %v988
      %v994 = vmul.f32 %v860, %v988
      %v995 = vmul.f32 %v862, %v988
      %v996 = vmul.f32 %v931, %v988
      %v997 = vmul.f32 %v933, %v988
      %999 = vset.pattern.permute.xlu0 0
      %1000 = vperm.xlu0 %999, %v984
      %v1001 = vpop.permute.xlu0 %1000
      %v1003 = vadd.f32 %v990, %v1001
      %v1004 = vadd.f32 %v991, %v1001
      %v1005 = vadd.f32 %v992, %v1001
      %v1006 = vadd.f32 %v993, %v1001
      %v1007 = vadd.f32 %v994, %v1001
      %v1008 = vadd.f32 %v995, %v1001
      %v1009 = vadd.f32 %v996, %v1001
      %v1010 = vadd.f32 %v997, %v1001
      %v1011 = vadd.f32 %v513, %v1003
      %v1012 = vadd.f32 %v512, %v1004
      %v1013 = vadd.f32 %v511, %v1005
      %v1014 = vadd.f32 %v510, %v1006
      %v1015 = vadd.f32 %v509, %v1007
      %v1016 = vadd.f32 %v508, %v1008
      %v1017 = vadd.f32 %v507, %v1009
      %v1018 = vadd.f32 %v506, %v1010
      %v1019 = vmul.f32 %v1011, 0.5
      %v1020 = vmul.f32 %v1012, 0.5
      %v1021 = vmul.f32 %v1013, 0.5
      %v1022 = vmul.f32 %v1014, 0.5
      %v1023 = vmul.f32 %v1015, 0.5
      %v1024 = vmul.f32 %v1016, 0.5
      %v1025 = vmul.f32 %v1017, 0.5
      %v1026 = vmul.f32 %v1018, 0.5
      %v1027 = vmul.f32 %v1011, 0.70710677
      %v1028 = vmul.f32 %v1012, 0.70710677
      %v1029 = vmul.f32 %v1013, 0.70710677
      %v1030 = vmul.f32 %v1014, 0.70710677
      %v1031 = vmul.f32 %v1015, 0.70710677
      %v1032 = vmul.f32 %v1016, 0.70710677
      %v1033 = vmul.f32 %v1017, 0.70710677
      %v1034 = vmul.f32 %v1018, 0.70710677
      %v1035 = vand.u32 2147483647, %v1027
      %v1036 = vand.u32 2147483647, %v1028
      %v1037 = vand.u32 2147483647, %v1029
      %v1038 = vand.u32 2147483647, %v1030
      %v1039 = vand.u32 2147483647, %v1031
      %v1040 = vand.u32 2147483647, %v1032
      %v1041 = vand.u32 2147483647, %v1033
      %v1042 = vand.u32 2147483647, %v1034
      %v1043 = vmul.f32 %v1035, 0.3275911
      %v1044 = vmul.f32 %v1036, 0.3275911
      %v1045 = vmul.f32 %v1037, 0.3275911
      %v1046 = vmul.f32 %v1038, 0.3275911
      %v1047 = vmul.f32 %v1039, 0.3275911
      %v1048 = vmul.f32 %v1040, 0.3275911
      %v1049 = vmul.f32 %v1041, 0.3275911
      %v1050 = vmul.f32 %v1042, 0.3275911
      %v1051 = vadd.f32 %v1043, 1.0
      %v1052 = vadd.f32 %v1044, 1.0
      %v1053 = vadd.f32 %v1045, 1.0
      %v1054 = vadd.f32 %v1046, 1.0
      %v1055 = vadd.f32 %v1047, 1.0
      %v1056 = vadd.f32 %v1048, 1.0
      %v1057 = vadd.f32 %v1049, 1.0
      %v1058 = vadd.f32 %v1050, 1.0
      %v1059 = vrcp.pop %v1051
      %v1060 = vmul.f32 1.0, %v1059
      %v1061 = vrcp.pop %v1052
      %v1062 = vmul.f32 1.0, %v1061
      %v1063 = vrcp.pop %v1053
      %v1064 = vmul.f32 1.0, %v1063
      %v1065 = vrcp.pop %v1054
      %v1066 = vmul.f32 1.0, %v1065
      %v1067 = vrcp.pop %v1055
      %v1068 = vmul.f32 1.0, %v1067
      %v1069 = vrcp.pop %v1056
      %v1070 = vmul.f32 1.0, %v1069
      %v1071 = vrcp.pop %v1057
      %v1072 = vmul.f32 1.0, %v1071
      %v1073 = vrcp.pop %v1058
      %v1074 = vmul.f32 1.0, %v1073
      %v1075 = vmul.f32 %v1060, 1.0614054
      %v1076 = vmul.f32 %v1062, 1.0614054
      %v1077 = vmul.f32 %v1064, 1.0614054
      %v1078 = vmul.f32 %v1066, 1.0614054
      %v1079 = vmul.f32 %v1068, 1.0614054
      %v1080 = vmul.f32 %v1070, 1.0614054
      %v1081 = vmul.f32 %v1072, 1.0614054
      %v1082 = vmul.f32 %v1074, 1.0614054
      %v1083 = vsub.f32 %v1075, 1.4531521
      %v1084 = vsub.f32 %v1076, 1.4531521
      %v1085 = vsub.f32 %v1077, 1.4531521
      %v1086 = vsub.f32 %v1078, 1.4531521
      %v1087 = vsub.f32 %v1079, 1.4531521
      %v1088 = vsub.f32 %v1080, 1.4531521
      %v1089 = vsub.f32 %v1081, 1.4531521
      %v1090 = vsub.f32 %v1082, 1.4531521
      %v1091 = vmul.f32 %v1083, %v1060
      %v1092 = vmul.f32 %v1084, %v1062
      %v1093 = vmul.f32 %v1085, %v1064
      %v1094 = vmul.f32 %v1086, %v1066
      %v1095 = vmul.f32 %v1087, %v1068
      %v1096 = vmul.f32 %v1088, %v1070
      %v1097 = vmul.f32 %v1089, %v1072
      %v1098 = vmul.f32 %v1090, %v1074
      %v1099 = vadd.f32 %v1091, 1.4214138
      %v1100 = vadd.f32 %v1092, 1.4214138
      %v1101 = vadd.f32 %v1093, 1.4214138
      %v1102 = vadd.f32 %v1094, 1.4214138
      %v1103 = vadd.f32 %v1095, 1.4214138
      %v1104 = vadd.f32 %v1096, 1.4214138
      %v1105 = vadd.f32 %v1097, 1.4214138
      %v1106 = vadd.f32 %v1098, 1.4214138
      %v1107 = vmul.f32 %v1099, %v1060
      %v1108 = vmul.f32 %v1100, %v1062
      %v1109 = vmul.f32 %v1101, %v1064
      %v1110 = vmul.f32 %v1102, %v1066
      %v1111 = vmul.f32 %v1103, %v1068
      %v1112 = vmul.f32 %v1104, %v1070
      %v1113 = vmul.f32 %v1105, %v1072
      %v1114 = vmul.f32 %v1106, %v1074
      %v1115 = vsub.f32 %v1107, 0.28449672
      %v1116 = vsub.f32 %v1108, 0.28449672
      %v1117 = vsub.f32 %v1109, 0.28449672
      %v1118 = vsub.f32 %v1110, 0.28449672
      %v1119 = vsub.f32 %v1111, 0.28449672
      %v1120 = vsub.f32 %v1112, 0.28449672
      %v1121 = vsub.f32 %v1113, 0.28449672
      %v1122 = vsub.f32 %v1114, 0.28449672
      %v1123 = vmul.f32 %v1115, %v1060
      %v1124 = vmul.f32 %v1116, %v1062
      %v1125 = vmul.f32 %v1117, %v1064
      %v1126 = vmul.f32 %v1118, %v1066
      %v1127 = vmul.f32 %v1119, %v1068
      %v1128 = vmul.f32 %v1120, %v1070
      %v1129 = vmul.f32 %v1121, %v1072
      %v1130 = vmul.f32 %v1122, %v1074
      %v1131 = vadd.f32 %v1123, 0.2548296
      %v1132 = vadd.f32 %v1124, 0.2548296
      %v1133 = vadd.f32 %v1125, 0.2548296
      %v1134 = vadd.f32 %v1126, 0.2548296
      %v1135 = vadd.f32 %v1127, 0.2548296
      %v1136 = vadd.f32 %v1128, 0.2548296
      %v1137 = vadd.f32 %v1129, 0.2548296
      %v1138 = vadd.f32 %v1130, 0.2548296
      %v1139 = vmul.f32 %v1131, %v1060
      %v1140 = vmul.f32 %v1132, %v1062
      %v1141 = vmul.f32 %v1133, %v1064
      %v1142 = vmul.f32 %v1134, %v1066
      %v1143 = vmul.f32 %v1135, %v1068
      %v1144 = vmul.f32 %v1136, %v1070
      %v1145 = vmul.f32 %v1137, %v1072
      %v1146 = vmul.f32 %v1138, %v1074
      %v1147 = vsub.f32 0.0, %v1035
      %v1148 = vsub.f32 0.0, %v1036
      %v1149 = vsub.f32 0.0, %v1037
      %v1150 = vsub.f32 0.0, %v1038
      %v1151 = vsub.f32 0.0, %v1039
      %v1152 = vsub.f32 0.0, %v1040
      %v1153 = vsub.f32 0.0, %v1041
      %v1154 = vsub.f32 0.0, %v1042
      %v1155 = vmul.f32 %v1147, %v1035
      %v1156 = vmul.f32 %v1148, %v1036
      %v1157 = vmul.f32 %v1149, %v1037
      %v1158 = vmul.f32 %v1150, %v1038
      %v1159 = vmul.f32 %v1151, %v1039
      %v1160 = vmul.f32 %v1152, %v1040
      %v1161 = vmul.f32 %v1153, %v1041
      %v1162 = vmul.f32 %v1154, %v1042
      %v1163 = vmul.f32 %v1155, 1.442695
      %v1164 = vpow.pop %v1163
      %v1165 = vmul.f32 %v1156, 1.442695
      %v1166 = vpow.pop %v1165
      %v1167 = vmul.f32 %v1157, 1.442695
      %v1168 = vpow.pop %v1167
      %v1169 = vmul.f32 %v1158, 1.442695
      %v1170 = vpow.pop %v1169
      %v1171 = vmul.f32 %v1159, 1.442695
      %v1172 = vpow.pop %v1171
      %v1173 = vmul.f32 %v1160, 1.442695
      %v1174 = vpow.pop %v1173
      %v1175 = vmul.f32 %v1161, 1.442695
      %v1176 = vpow.pop %v1175
      %v1177 = vmul.f32 %v1162, 1.442695
      %v1178 = vpow.pop %v1177
      %v1179 = vmul.f32 %v1139, %v1164
      %v1180 = vmul.f32 %v1140, %v1166
      %v1181 = vmul.f32 %v1141, %v1168
      %v1182 = vmul.f32 %v1142, %v1170
      %v1183 = vmul.f32 %v1143, %v1172
      %v1184 = vmul.f32 %v1144, %v1174
      %v1185 = vmul.f32 %v1145, %v1176
      %v1186 = vmul.f32 %v1146, %v1178
      %v1187 = vsub.f32 1.0, %v1179
      %v1188 = vsub.f32 1.0, %v1180
      %v1189 = vsub.f32 1.0, %v1181
      %v1190 = vsub.f32 1.0, %v1182
      %v1191 = vsub.f32 1.0, %v1183
      %v1192 = vsub.f32 1.0, %v1184
      %v1193 = vsub.f32 1.0, %v1185
      %v1194 = vsub.f32 1.0, %v1186
      %vm1195 = vcmp.ge.f32.partialorder %v1027, 0.0
      %vm1196 = vcmp.ge.f32.partialorder %v1028, 0.0
      %vm1197 = vcmp.ge.f32.partialorder %v1029, 0.0
      %vm1198 = vcmp.ge.f32.partialorder %v1030, 0.0
      %vm1199 = vcmp.ge.f32.partialorder %v1031, 0.0
      %vm1200 = vcmp.ge.f32.partialorder %v1032, 0.0
      %vm1201 = vcmp.ge.f32.partialorder %v1033, 0.0
      %vm1202 = vcmp.ge.f32.partialorder %v1034, 0.0
      %v1203 = vsub.f32 0.0, %v1187
      %v1204 = vsub.f32 0.0, %v1188
      %v1205 = vsub.f32 0.0, %v1189
      %v1206 = vsub.f32 0.0, %v1190
      %v1207 = vsub.f32 0.0, %v1191
      %v1208 = vsub.f32 0.0, %v1192
      %v1209 = vsub.f32 0.0, %v1193
      %v1210 = vsub.f32 0.0, %v1194
      %v1211 = vsel %vm1195, %v1187, %v1203
      %v1212 = vsel %vm1196, %v1188, %v1204
      %v1213 = vsel %vm1197, %v1189, %v1205
      %v1214 = vsel %vm1198, %v1190, %v1206
      %v1215 = vsel %vm1199, %v1191, %v1207
      %v1216 = vsel %vm1200, %v1192, %v1208
      %v1217 = vsel %vm1201, %v1193, %v1209
      %v1218 = vsel %vm1202, %v1194, %v1210
      %v1219 = vadd.f32 %v1211, 1.0
      %v1220 = vadd.f32 %v1212, 1.0
      %v1221 = vadd.f32 %v1213, 1.0
      %v1222 = vadd.f32 %v1214, 1.0
      %v1223 = vadd.f32 %v1215, 1.0
      %v1224 = vadd.f32 %v1216, 1.0
      %v1225 = vadd.f32 %v1217, 1.0
      %v1226 = vadd.f32 %v1218, 1.0
      %v1227 = vmul.f32 %v1019, %v1219
      %v1228 = vmul.f32 %v1020, %v1220
      %v1229 = vmul.f32 %v1021, %v1221
      %v1230 = vmul.f32 %v1022, %v1222
      %v1231 = vmul.f32 %v1023, %v1223
      %v1232 = vmul.f32 %v1024, %v1224
      %v1233 = vmul.f32 %v1025, %v1225
      %v1234 = vmul.f32 %v1026, %v1226
      %v1235 = vpack.c.bf16 %v1227, %v1227
      %v1236 = vpack.c.bf16 %v1228, %v1228
      %v1237 = vpack.c.bf16 %v1229, %v1229
      %v1238 = vpack.c.bf16 %v1230, %v1230
      %v1239 = vpack.c.bf16 %v1231, %v1231
      %v1240 = vpack.c.bf16 %v1232, %v1232
      %v1241 = vpack.c.bf16 %v1233, %v1233
      %v1242 = vpack.c.bf16 %v1234, %v1234
      %v1251 = vunpack.c.l.b16 %v1235
      %v1252 = vunpack.c.l.b16 %v1236
      %v1253 = vunpack.c.l.b16 %v1237
      %v1254 = vunpack.c.l.b16 %v1238
      %v1255 = vunpack.c.l.b16 %v1239
      %v1256 = vunpack.c.l.b16 %v1240
      %v1257 = vunpack.c.l.b16 %v1241
      %v1258 = vunpack.c.l.b16 %v1242
      %v1259 = vpack.c.b16 %v1252, %v1251
      %v1260 = vpack.c.b16 %v1254, %v1253
      %v1261 = vpack.c.b16 %v1256, %v1255
      %v1262 = vpack.c.b16 %v1258, %v1257
      %1267 = vst [vmem:[%s214] sm:$0xff] %v1259
      %1268 = vst [vmem:[%s214 + $0x8] sm:$0xff] %v1260
      %1269 = vst [vmem:[%s214 + $0x10] sm:$0xff] %v1261
      %1270 = vst [vmem:[%s214 + $0x18] sm:$0xff] %v1262
      %p1271 = scmp.lt.s32.totalorder %s15, 1
      %s1272 = scalar_select %p1271, %s15, 1
      %s1273 = smul.addr %s1272, 8
      %s1274 = smul.addr %s1273, 4
      %s1275 = scalar_lea.vmem %s4, %s1274
      // Predicated region
      $region37: #{up_forward.2} parent=35 // pred_check
        %p1276 = pneg %p127
      $region38: #{up_forward.2} parent=35 // pred_check_branch
        %1278 = sbr.rel (%p1276) target = $region40
      $region39: #{up_forward.2} parent=35 // pred_region
        _
      $region40: #{up_forward.2} parent=35 // pred_fallthru
        _
    $region36: #{up_forward.2} parent=5 // pred_fallthru
      _
    %p1279 = scmp.le.s32.totalorder 2, %s10
    // Predicated region
    $region41: #{up_forward.2} parent=5 // pred_check
      %p1280 = pneg %p1279
    $region42: #{up_forward.2} parent=5 // pred_check_branch
      %1282 = sbr.rel (%p1280) target = $region44
    $region43: #{up_forward.2} parent=5 // pred_region
      %s1283 = ssub.s32 %s10, 2
      // Predicated region
      $region45: #{up_forward.2} parent=43 // pred_check
        %p1284 = pneg %p133
      $region46: #{up_forward.2} parent=43 // pred_check_branch
        %1286 = sbr.rel (%p1284) target = $region48
      $region47: #{up_forward.2} parent=43 // pred_region
        %p1287 = scmp.lt.s32.totalorder %s16, 1
        %s1288 = scalar_select %p1287, %s16, 1
        %s1289 = smul.addr %s1288, 8
        %s1290 = smul.addr %s1289, 4
        %s1291 = scalar_lea.vmem %s4, %s1290
      $region48: #{up_forward.2} parent=43 // pred_fallthru
        _
    $region44: #{up_forward.2} parent=5 // pred_fallthru
      _
  $region6: #{up_forward.2} parent=0 // loop_footer
    %s14 = sadd.s32 1, %s10
  $region7: #{up_forward.2} parent=0 // loop_footer_branch
    %9 = sbr.rel target = $region3
  $region8: #{up_forward.2} parent=0 // loop_exit
    _

</llo_original>
